<compile_context>
chip_gen: v5e
topology: v5e:2x2
jax: 0.10.0
libtpu: 0.0.40
codegen_flags: <defaults>
</compile_context>

<pallas_src>
import jax
import jax.numpy as jnp
from jax.experimental import pallas as pl
from jax.experimental.pallas import tpu as pltpu


def mlp_kernel(x_ref,
               w0_ref, b0_ref,
               w1_ref, b1_ref,
               w2_ref, b2_ref,
               w3_ref, b3_ref,
               w4_ref, b4_ref,
               o_ref):
    """Fully-fused 5-layer MLP forward for one batch tile (all weights VMEM-resident)."""
    h = x_ref[...].astype(jnp.bfloat16)

    # dense: 512 -> 512, ReLU
    a = jnp.dot(h, w0_ref[...], preferred_element_type=jnp.float32) + b0_ref[...]
    h = jnp.maximum(a, 0.0).astype(jnp.bfloat16)

    # dense1: 512 -> 256, ReLU
    a = jnp.dot(h, w1_ref[...], preferred_element_type=jnp.float32) + b1_ref[...]
    h = jnp.maximum(a, 0.0).astype(jnp.bfloat16)

    # dense2: 256 -> 256, ReLU
    a = jnp.dot(h, w2_ref[...], preferred_element_type=jnp.float32) + b2_ref[...]
    h = jnp.maximum(a, 0.0).astype(jnp.bfloat16)

    # dense3: 256 -> 128, ReLU
    a = jnp.dot(h, w3_ref[...], preferred_element_type=jnp.float32) + b3_ref[...]
    h = jnp.maximum(a, 0.0).astype(jnp.bfloat16)

    # dense4: 128 -> 128 (lane-padded from 2; no activation)
    a = jnp.dot(h, w4_ref[...], preferred_element_type=jnp.float32) + b4_ref[...]

    o_ref[...] = a.astype(o_ref.dtype)


def _round_up(n, m):
    return ((n + m - 1) // m) * m


def mnist_net_forward(x, params, *, batch_tile=256):
    """Runs the fused MLP Pallas kernel over the batch dimension.

    x: (B, 512) float32
    params: list of (W, b) with W shape (in, out) [f32], b shape (1, out) [f32]
    returns: (B, 2) float32
    """
    B, D_in = x.shape
    assert D_in == 512
    out_dim = params[-1][0].shape[1]  # 2
    LANE_OUT = 128                    # lane-dense padded output width

    # Pick a batch tile: full (sublane-rounded) batch for small B, else batch_tile.
    tile = min(batch_tile, _round_up(B, 8))
    Bp = _round_up(B, tile)
    if Bp != B:
        x = jnp.pad(x, ((0, Bp - B), (0, 0)))
    x = x.astype(jnp.float32)

    # Build flattened (bf16 W, f32 b) args; zero-pad the last layer to LANE_OUT lanes.
    n_layers = len(params)
    in_specs = [pl.BlockSpec((tile, D_in), lambda i: (i, 0))]
    flat_params = []
    for li, (w, b) in enumerate(params):
        if li == n_layers - 1:
            w = jnp.pad(w, ((0, 0), (0, LANE_OUT - w.shape[1])))
            b = jnp.pad(b, ((0, 0), (0, LANE_OUT - b.shape[1])))
        w = w.astype(jnp.bfloat16)
        b = b.astype(jnp.float32)
        in_specs.append(pl.BlockSpec(w.shape, lambda i: (0, 0)))
        in_specs.append(pl.BlockSpec(b.shape, lambda i: (0, 0)))
        flat_params.extend([w, b])

    out_spec = pl.BlockSpec((tile, LANE_OUT), lambda i: (i, 0))

    flops = 2 * Bp * (512 * 512 + 512 * 256 + 256 * 256 + 256 * 128 + 128 * LANE_OUT)
    bytes_accessed = (x.size * x.dtype.itemsize
                      + sum(int(a.size) * a.dtype.itemsize for a in flat_params)
                      + Bp * LANE_OUT * 4)

    out = pl.pallas_call(
        mlp_kernel,
        out_shape=jax.ShapeDtypeStruct((Bp, LANE_OUT), jnp.float32),
        grid_spec=pltpu.PrefetchScalarGridSpec(
            num_scalar_prefetch=0,
            grid=(Bp // tile,),
            in_specs=in_specs,
            out_specs=out_spec,
        ),
        compiler_params=pltpu.CompilerParams(
            dimension_semantics=("parallel",),
        ),
        cost_estimate=pl.CostEstimate(
            flops=flops, transcendentals=0, bytes_accessed=bytes_accessed),
    )(x, *flat_params)

    return out[:B, :out_dim]


def init_params(key):
    """Init mimicking PyTorch nn.Linear default (uniform +/- 1/sqrt(fan_in)).

    Returns list of (W, b) with W shape (in, out) — the transpose of PyTorch's
    (out, in) layout — and b shape (1, out), all float32.
    """
    dims = [(512, 512), (512, 256), (256, 256), (256, 128), (128, 2)]
    params = []
    for (fan_in, fan_out) in dims:
        key, kw, kb = jax.random.split(key, 3)
        bound = 1.0 / jnp.sqrt(jnp.float32(fan_in))
        w = jax.random.uniform(kw, (fan_in, fan_out), jnp.float32, -bound, bound)
        b = jax.random.uniform(kb, (1, fan_out), jnp.float32, -bound, bound)
        params.append((w, b))
    return params


def reference_forward(x, params):
    """Pure-JAX f32 reference for correctness checking."""
    h = x
    for i, (w, b) in enumerate(params):
        h = h @ w + b
        if i < len(params) - 1:
            h = jnp.maximum(h, 0.0)
    return h


def _check(out, ref, name):
    assert out.shape == ref.shape, (out.shape, ref.shape)
    err = jnp.max(jnp.abs(out - ref)) / (jnp.max(jnp.abs(ref)) + 1e-6)
    assert float(err) < 3e-2, f"{name}: relative error {float(err):.4f} too large"


if __name__ == "__main__":
    key = jax.random.PRNGKey(0)
    key, kx_small, kx_big = jax.random.split(key, 3)
    params = init_params(key)

    # Small batch (single tile path).
    B_small = 8
    x_small = jax.random.normal(kx_small, (B_small, 512), jnp.float32)
    out_small = jax.block_until_ready(mnist_net_forward(x_small, params))
    _check(out_small, reference_forward(x_small, params), "small-batch")

    # Larger batch exercising the 256-row tile + multi-step grid path.
    B_big = 512
    x_big = jax.random.normal(kx_big, (B_big, 512), jnp.float32)
    out_big = jax.block_until_ready(mnist_net_forward(x_big, params, batch_tile=256))
    _check(out_big, reference_forward(x_big, params), "big-batch")

    assert out_small.shape == (B_small, 2)
    assert out_big.shape == (B_big, 2)
    print("KERNEL_OK")
</pallas_src>

<mosaic_0001>
module attributes {stable_mosaic.version = 11 : i64} {
  func.func @mlp_kernel(%arg0: i32, %arg1: memref<8x512xf32, #tpu.memory_space<vmem>>, %arg2: memref<512x512xbf16, #tpu.memory_space<vmem>>, %arg3: memref<1x512xf32, #tpu.memory_space<vmem>>, %arg4: memref<512x256xbf16, #tpu.memory_space<vmem>>, %arg5: memref<1x256xf32, #tpu.memory_space<vmem>>, %arg6: memref<256x256xbf16, #tpu.memory_space<vmem>>, %arg7: memref<1x256xf32, #tpu.memory_space<vmem>>, %arg8: memref<256x128xbf16, #tpu.memory_space<vmem>>, %arg9: memref<1x128xf32, #tpu.memory_space<vmem>>, %arg10: memref<128x128xbf16, #tpu.memory_space<vmem>>, %arg11: memref<1x128xf32, #tpu.memory_space<vmem>>, %arg12: memref<8x128xf32, #tpu.memory_space<vmem>>) attributes {dimension_semantics = [#tpu.dimension_semantics<parallel>], iteration_bounds = array<i64: 1>, scalar_prefetch = 0 : i64, scratch_operands = 0 : i64, tpu.core_type = #tpu.core_type<tc>, window_params = [{transform_indices = @transform_0, window_bounds = array<i64: 8, 512>}, {pipeline_mode = #tpu.pipeline_mode<synchronous>, transform_indices = @transform_1, window_bounds = array<i64: 512, 512>}, {pipeline_mode = #tpu.pipeline_mode<synchronous>, transform_indices = @transform_2, window_bounds = array<i64: 1, 512>}, {pipeline_mode = #tpu.pipeline_mode<synchronous>, transform_indices = @transform_3, window_bounds = array<i64: 512, 256>}, {pipeline_mode = #tpu.pipeline_mode<synchronous>, transform_indices = @transform_4, window_bounds = array<i64: 1, 256>}, {pipeline_mode = #tpu.pipeline_mode<synchronous>, transform_indices = @transform_5, window_bounds = array<i64: 256, 256>}, {pipeline_mode = #tpu.pipeline_mode<synchronous>, transform_indices = @transform_6, window_bounds = array<i64: 1, 256>}, {pipeline_mode = #tpu.pipeline_mode<synchronous>, transform_indices = @transform_7, window_bounds = array<i64: 256, 128>}, {pipeline_mode = #tpu.pipeline_mode<synchronous>, transform_indices = @transform_8, window_bounds = array<i64: 1, 128>}, {pipeline_mode = #tpu.pipeline_mode<synchronous>, transform_indices = @transform_9, window_bounds = array<i64: 128, 128>}, {pipeline_mode = #tpu.pipeline_mode<synchronous>, transform_indices = @transform_10, window_bounds = array<i64: 1, 128>}, {transform_indices = @transform_11, window_bounds = array<i64: 8, 128>}]} {
    %c0 = arith.constant 0 : index
    %c0_0 = arith.constant 0 : index
    %0 = vector.load %arg1[%c0, %c0_0] : memref<8x512xf32, #tpu.memory_space<vmem>>, vector<8x512xf32>
    %1 = arith.truncf %0 : vector<8x512xf32> to vector<8x512xbf16>
    %c0_1 = arith.constant 0 : index
    %c0_2 = arith.constant 0 : index
    %2 = vector.load %arg2[%c0_1, %c0_2] : memref<512x512xbf16, #tpu.memory_space<vmem>>, vector<512x512xbf16>
    %cst = arith.constant dense<0.000000e+00> : vector<8x512xf32>
    %3 = tpu.matmul %1, %2, %cst {dimension_numbers = #tpu.dot_dimension_numbers<[1], [0], [0], [1], [0, 0, 1, 1], [], []>} : vector<8x512xbf16>, vector<512x512xbf16>, vector<8x512xf32> -> vector<8x512xf32>
    %c0_3 = arith.constant 0 : index
    %c0_4 = arith.constant 0 : index
    %4 = vector.load %arg3[%c0_3, %c0_4] : memref<1x512xf32, #tpu.memory_space<vmem>>, vector<1x512xf32>
    %5 = vector.broadcast %4 : vector<1x512xf32> to vector<8x512xf32>
    %6 = arith.addf %3, %5 : vector<8x512xf32>
    %cst_5 = arith.constant 0.000000e+00 : f32
    %7 = vector.broadcast %cst_5 : f32 to vector<8x512xf32>
    %8 = arith.maximumf %6, %7 : vector<8x512xf32>
    %9 = arith.truncf %8 : vector<8x512xf32> to vector<8x512xbf16>
    %c0_6 = arith.constant 0 : index
    %c0_7 = arith.constant 0 : index
    %10 = vector.load %arg4[%c0_6, %c0_7] : memref<512x256xbf16, #tpu.memory_space<vmem>>, vector<512x256xbf16>
    %cst_8 = arith.constant dense<0.000000e+00> : vector<8x256xf32>
    %11 = tpu.matmul %9, %10, %cst_8 {dimension_numbers = #tpu.dot_dimension_numbers<[1], [0], [0], [1], [0, 0, 1, 1], [], []>} : vector<8x512xbf16>, vector<512x256xbf16>, vector<8x256xf32> -> vector<8x256xf32>
    %c0_9 = arith.constant 0 : index
    %c0_10 = arith.constant 0 : index
    %12 = vector.load %arg5[%c0_9, %c0_10] : memref<1x256xf32, #tpu.memory_space<vmem>>, vector<1x256xf32>
    %13 = vector.broadcast %12 : vector<1x256xf32> to vector<8x256xf32>
    %14 = arith.addf %11, %13 : vector<8x256xf32>
    %cst_11 = arith.constant 0.000000e+00 : f32
    %15 = vector.broadcast %cst_11 : f32 to vector<8x256xf32>
    %16 = arith.maximumf %14, %15 : vector<8x256xf32>
    %17 = arith.truncf %16 : vector<8x256xf32> to vector<8x256xbf16>
    %c0_12 = arith.constant 0 : index
    %c0_13 = arith.constant 0 : index
    %18 = vector.load %arg6[%c0_12, %c0_13] : memref<256x256xbf16, #tpu.memory_space<vmem>>, vector<256x256xbf16>
    %cst_14 = arith.constant dense<0.000000e+00> : vector<8x256xf32>
    %19 = tpu.matmul %17, %18, %cst_14 {dimension_numbers = #tpu.dot_dimension_numbers<[1], [0], [0], [1], [0, 0, 1, 1], [], []>} : vector<8x256xbf16>, vector<256x256xbf16>, vector<8x256xf32> -> vector<8x256xf32>
    %c0_15 = arith.constant 0 : index
    %c0_16 = arith.constant 0 : index
    %20 = vector.load %arg7[%c0_15, %c0_16] : memref<1x256xf32, #tpu.memory_space<vmem>>, vector<1x256xf32>
    %21 = vector.broadcast %20 : vector<1x256xf32> to vector<8x256xf32>
    %22 = arith.addf %19, %21 : vector<8x256xf32>
    %cst_17 = arith.constant 0.000000e+00 : f32
    %23 = vector.broadcast %cst_17 : f32 to vector<8x256xf32>
    %24 = arith.maximumf %22, %23 : vector<8x256xf32>
    %25 = arith.truncf %24 : vector<8x256xf32> to vector<8x256xbf16>
    %c0_18 = arith.constant 0 : index
    %c0_19 = arith.constant 0 : index
    %26 = vector.load %arg8[%c0_18, %c0_19] : memref<256x128xbf16, #tpu.memory_space<vmem>>, vector<256x128xbf16>
    %cst_20 = arith.constant dense<0.000000e+00> : vector<8x128xf32>
    %27 = tpu.matmul %25, %26, %cst_20 {dimension_numbers = #tpu.dot_dimension_numbers<[1], [0], [0], [1], [0, 0, 1, 1], [], []>} : vector<8x256xbf16>, vector<256x128xbf16>, vector<8x128xf32> -> vector<8x128xf32>
    %c0_21 = arith.constant 0 : index
    %c0_22 = arith.constant 0 : index
    %28 = vector.load %arg9[%c0_21, %c0_22] : memref<1x128xf32, #tpu.memory_space<vmem>>, vector<1x128xf32>
    %29 = vector.broadcast %28 : vector<1x128xf32> to vector<8x128xf32>
    %30 = arith.addf %27, %29 : vector<8x128xf32>
    %cst_23 = arith.constant 0.000000e+00 : f32
    %31 = vector.broadcast %cst_23 : f32 to vector<8x128xf32>
    %32 = arith.maximumf %30, %31 : vector<8x128xf32>
    %33 = arith.truncf %32 : vector<8x128xf32> to vector<8x128xbf16>
    %c0_24 = arith.constant 0 : index
    %c0_25 = arith.constant 0 : index
    %34 = vector.load %arg10[%c0_24, %c0_25] : memref<128x128xbf16, #tpu.memory_space<vmem>>, vector<128x128xbf16>
    %cst_26 = arith.constant dense<0.000000e+00> : vector<8x128xf32>
    %35 = tpu.matmul %33, %34, %cst_26 {dimension_numbers = #tpu.dot_dimension_numbers<[1], [0], [0], [1], [0, 0, 1, 1], [], []>} : vector<8x128xbf16>, vector<128x128xbf16>, vector<8x128xf32> -> vector<8x128xf32>
    %c0_27 = arith.constant 0 : index
    %c0_28 = arith.constant 0 : index
    %36 = vector.load %arg11[%c0_27, %c0_28] : memref<1x128xf32, #tpu.memory_space<vmem>>, vector<1x128xf32>
    %37 = vector.broadcast %36 : vector<1x128xf32> to vector<8x128xf32>
    %38 = arith.addf %35, %37 : vector<8x128xf32>
    %c0_29 = arith.constant 0 : index
    %c0_30 = arith.constant 0 : index
    %39 = vector.load %arg12[%c0_29, %c0_30] : memref<8x128xf32, #tpu.memory_space<vmem>>, vector<8x128xf32>
    tpu.vector_store %arg12[%c0_29, %c0_30], %38 {strides = array<i32>} : memref<8x128xf32, #tpu.memory_space<vmem>>, vector<8x128xf32>,
    return
  }
  func.func @transform_0(%arg0: i32) -> (i32, i32) {
    %c0_i32 = arith.constant 0 : i32
    %c0_i32_0 = arith.constant 0 : i32
    return %arg0, %c0_i32 : i32, i32
  }
  func.func @transform_1(%arg0: i32) -> (i32, i32) {
    %c0_i32 = arith.constant 0 : i32
    %c0_i32_0 = arith.constant 0 : i32
    %c0_i32_1 = arith.constant 0 : i32
    return %c0_i32, %c0_i32_0 : i32, i32
  }
  func.func @transform_2(%arg0: i32) -> (i32, i32) {
    %c0_i32 = arith.constant 0 : i32
    %c0_i32_0 = arith.constant 0 : i32
    %c0_i32_1 = arith.constant 0 : i32
    return %c0_i32, %c0_i32_0 : i32, i32
  }
  func.func @transform_3(%arg0: i32) -> (i32, i32) {
    %c0_i32 = arith.constant 0 : i32
    %c0_i32_0 = arith.constant 0 : i32
    %c0_i32_1 = arith.constant 0 : i32
    return %c0_i32, %c0_i32_0 : i32, i32
  }
  func.func @transform_4(%arg0: i32) -> (i32, i32) {
    %c0_i32 = arith.constant 0 : i32
    %c0_i32_0 = arith.constant 0 : i32
    %c0_i32_1 = arith.constant 0 : i32
    return %c0_i32, %c0_i32_0 : i32, i32
  }
  func.func @transform_5(%arg0: i32) -> (i32, i32) {
    %c0_i32 = arith.constant 0 : i32
    %c0_i32_0 = arith.constant 0 : i32
    %c0_i32_1 = arith.constant 0 : i32
    return %c0_i32, %c0_i32_0 : i32, i32
  }
  func.func @transform_6(%arg0: i32) -> (i32, i32) {
    %c0_i32 = arith.constant 0 : i32
    %c0_i32_0 = arith.constant 0 : i32
    %c0_i32_1 = arith.constant 0 : i32
    return %c0_i32, %c0_i32_0 : i32, i32
  }
  func.func @transform_7(%arg0: i32) -> (i32, i32) {
    %c0_i32 = arith.constant 0 : i32
    %c0_i32_0 = arith.constant 0 : i32
    %c0_i32_1 = arith.constant 0 : i32
    return %c0_i32, %c0_i32_0 : i32, i32
  }
  func.func @transform_8(%arg0: i32) -> (i32, i32) {
    %c0_i32 = arith.constant 0 : i32
    %c0_i32_0 = arith.constant 0 : i32
    %c0_i32_1 = arith.constant 0 : i32
    return %c0_i32, %c0_i32_0 : i32, i32
  }
  func.func @transform_9(%arg0: i32) -> (i32, i32) {
    %c0_i32 = arith.constant 0 : i32
    %c0_i32_0 = arith.constant 0 : i32
    %c0_i32_1 = arith.constant 0 : i32
    return %c0_i32, %c0_i32_0 : i32, i32
  }
  func.func @transform_10(%arg0: i32) -> (i32, i32) {
    %c0_i32 = arith.constant 0 : i32
    %c0_i32_0 = arith.constant 0 : i32
    %c0_i32_1 = arith.constant 0 : i32
    return %c0_i32, %c0_i32_0 : i32, i32
  }
  func.func @transform_11(%arg0: i32) -> (i32, i32) {
    %c0_i32 = arith.constant 0 : i32
    %c0_i32_0 = arith.constant 0 : i32
    return %arg0, %c0_i32 : i32, i32
  }
}

</mosaic_0001>

<llo_original>
// kernel: tpu_custom_call.1
$region0: #{tpu_custom_call.1}
  #allocation0 [shape = 'u32[]', space=smem, size = 0x4, offset = 0x4, fixed_abs, tag = 'smem constant byte address 0x4 - core index']
  #allocation1 [shape = 'u32[72,128]{1,0:T(1,128)}', space=vmem, size = 0x9000, scoped, tag = 'internal scratch']
  %s0 = inlined_call_operand.hbm [shape: f32[8,512], index: 0, kind: input, shape index: {}]
  %s1 = inlined_call_operand.hbm [shape: bf16[512,512], index: 1, kind: input, shape index: {}]
  %s2 = inlined_call_operand.hbm [shape: f32[1,512], index: 2, kind: input, shape index: {}]
  %s3 = inlined_call_operand.hbm [shape: bf16[512,256], index: 3, kind: input, shape index: {}]
  %s4 = inlined_call_operand.vmem [shape: f32[1,256], index: 4, kind: input, shape index: {}]
  %s5 = inlined_call_operand.hbm [shape: bf16[256,256], index: 5, kind: input, shape index: {}]
  %s6 = inlined_call_operand.vmem [shape: f32[1,256], index: 6, kind: input, shape index: {}]
  %s7 = inlined_call_operand.hbm [shape: bf16[256,128], index: 7, kind: input, shape index: {}]
  %s8 = inlined_call_operand.vmem [shape: f32[1,128], index: 8, kind: input, shape index: {}]
  %s9 = inlined_call_operand.hbm [shape: bf16[128,128], index: 9, kind: input, shape index: {}]
  %s10 = inlined_call_operand.vmem [shape: f32[1,128], index: 10, kind: input, shape index: {}]
  %s11 = inlined_call_operand.hbm [shape: f32[8,128], index: 11, kind: output, shape index: {}]
  %s12 = sld [smem:[#allocation0]]
  $region82: #{tpu_custom_call.1} parent=0
    _
  %s14 = ssub.s32 1, %s12
  %s15 = scalar_select 0, %s14, %s12
  $region1: #{tpu_custom_call.1} parent=0
    #allocation2 [shape = 'u8[16384]{0}', space=vmem, size = 0x4000, scoped, tag = 'input window, operand 0, single buffered']
    #allocation3 [shape = 's32[1]{0}', space=sflag, size = 0x4, scoped, tag = 'scoped memory for tpu_custom_call.1']
    #allocation4 [shape = 's32[1]{0}', space=sflag, size = 0x4, scoped, tag = 'scoped memory for tpu_custom_call.1']
    #allocation5 [shape = 'u8[524288]{0}', space=vmem, size = 0x80000, scoped, tag = 'input window, operand 1, single buffered']
    #allocation6 [shape = 's32[1]{0}', space=sflag, size = 0x4, scoped, tag = 'scoped memory for tpu_custom_call.1']
    #allocation7 [shape = 'u8[2048]{0}', space=vmem, size = 0x800, scoped, tag = 'input window, operand 2, single buffered']
    #allocation8 [shape = 'u8[262144]{0}', space=vmem, size = 0x40000, scoped, tag = 'input window, operand 3, single buffered']
    #allocation9 [shape = 's32[1]{0}', space=sflag, size = 0x4, scoped, tag = 'scoped memory for tpu_custom_call.1']
    #allocation10 [shape = 'u8[131072]{0}', space=vmem, size = 0x20000, scoped, tag = 'input window, operand 5, single buffered']
    #allocation11 [shape = 'u8[65536]{0}', space=vmem, size = 0x10000, scoped, tag = 'input window, operand 7, single buffered']
    #allocation12 [shape = 's32[1]{0}', space=sflag, size = 0x4, scoped, tag = 'scoped memory for tpu_custom_call.1']
    #allocation13 [shape = 'u8[32768]{0}', space=vmem, size = 0x8000, scoped, tag = 'input window, operand 9, single buffered']
    #allocation14 [shape = 'u8[4096]{0}', space=vmem, size = 0x1000, scoped, tag = 'output window, operand 0, single buffered']
    %16 = vsyncpa [#allocation3], 0
    %17 = vsyncpa [#allocation6], 0
    %18 = vsyncpa [#allocation9], 0
    %19 = vsyncpa [#allocation12], 0
    %20 = vsyncpa [#allocation4], 0
    // Predicated region
    $region2: #{tpu_custom_call.1} parent=1 // pred_check
      _
    $region3: #{tpu_custom_call.1} parent=1 // pred_check_branch
      %22 = sbr.rel (0) target = $region5
    $region4: #{tpu_custom_call.1} parent=1 // pred_region
      %24 = vsyncadd [#allocation3], 0
      %s26 = sshll.u32 %s0, 4
      %s27 = int_to_ptr.hbm [resolvable:$true] %s26
      %s28 = sshll.u32 [#allocation2], 4
      %s29 = int_to_ptr.vmem [resolvable:$true] %s28
      %31 = dma.hbm_to_vmem [thread:$0]  %s27, 512, %s29, [#allocation3]
    $region5: #{tpu_custom_call.1} parent=1 // pred_fallthru
      _
    // Predicated region
    $region6: #{tpu_custom_call.1} parent=1 // pred_check
      _
    $region7: #{tpu_custom_call.1} parent=1 // pred_check_branch
      %33 = sbr.rel (0) target = $region9
    $region8: #{tpu_custom_call.1} parent=1 // pred_region
      %35 = vsyncadd [#allocation6], 0
      %s36 = sshll.u32 %s1, 4
      %s37 = int_to_ptr.hbm [resolvable:$true] %s36
      %s38 = sshll.u32 [#allocation5], 4
      %s39 = int_to_ptr.vmem [resolvable:$true] %s38
      %44 = dma.hbm_to_vmem [thread:$0]  %s37, 16384, %s39, [#allocation6], 256, 256, 16
    $region9: #{tpu_custom_call.1} parent=1 // pred_fallthru
      _
    // Predicated region
    $region10: #{tpu_custom_call.1} parent=1 // pred_check
      _
    $region11: #{tpu_custom_call.1} parent=1 // pred_check_branch
      %46 = sbr.rel (0) target = $region13
    $region12: #{tpu_custom_call.1} parent=1 // pred_region
      %48 = vsyncadd [#allocation6], 0
      %s50 = sshll.u32 %s2, 4
      %s51 = int_to_ptr.hbm [resolvable:$true] %s50
      %s52 = sshll.u32 [#allocation7], 4
      %s53 = int_to_ptr.vmem [resolvable:$true] %s52
      %55 = dma.hbm_to_vmem [thread:$0]  %s51, 64, %s53, [#allocation6]
    $region13: #{tpu_custom_call.1} parent=1 // pred_fallthru
      _
    // Predicated region
    $region14: #{tpu_custom_call.1} parent=1 // pred_check
      _
    $region15: #{tpu_custom_call.1} parent=1 // pred_check_branch
      %57 = sbr.rel (0) target = $region17
    $region16: #{tpu_custom_call.1} parent=1 // pred_region
      %59 = vsyncadd [#allocation9], 0
      %s60 = sshll.u32 %s3, 4
      %s61 = int_to_ptr.hbm [resolvable:$true] %s60
      %s62 = sshll.u32 [#allocation8], 4
      %s63 = int_to_ptr.vmem [resolvable:$true] %s62
      %68 = dma.hbm_to_vmem [thread:$0]  %s61, 8192, %s63, [#allocation9], 128, 128, 8
    $region17: #{tpu_custom_call.1} parent=1 // pred_fallthru
      _
    // Predicated region
    $region18: #{tpu_custom_call.1} parent=1 // pred_check
      _
    $region19: #{tpu_custom_call.1} parent=1 // pred_check_branch
      %70 = sbr.rel (0) target = $region21
    $region20: #{tpu_custom_call.1} parent=1 // pred_region
      _
    $region21: #{tpu_custom_call.1} parent=1 // pred_fallthru
      _
    // Predicated region
    $region22: #{tpu_custom_call.1} parent=1 // pred_check
      _
    $region23: #{tpu_custom_call.1} parent=1 // pred_check_branch
      %72 = sbr.rel (0) target = $region25
    $region24: #{tpu_custom_call.1} parent=1 // pred_region
      %74 = vsyncadd [#allocation9], 0
      %s75 = sshll.u32 %s5, 4
      %s76 = int_to_ptr.hbm [resolvable:$true] %s75
      %s77 = sshll.u32 [#allocation10], 4
      %s78 = int_to_ptr.vmem [resolvable:$true] %s77
      %83 = dma.hbm_to_vmem [thread:$0]  %s76, 4096, %s78, [#allocation9], 128, 128, 8
    $region25: #{tpu_custom_call.1} parent=1 // pred_fallthru
      _
    // Predicated region
    $region26: #{tpu_custom_call.1} parent=1 // pred_check
      _
    $region27: #{tpu_custom_call.1} parent=1 // pred_check_branch
      %85 = sbr.rel (0) target = $region29
    $region28: #{tpu_custom_call.1} parent=1 // pred_region
      _
    $region29: #{tpu_custom_call.1} parent=1 // pred_fallthru
      _
    // Predicated region
    $region30: #{tpu_custom_call.1} parent=1 // pred_check
      _
    $region31: #{tpu_custom_call.1} parent=1 // pred_check_branch
      %87 = sbr.rel (0) target = $region33
    $region32: #{tpu_custom_call.1} parent=1 // pred_region
      %89 = vsyncadd [#allocation12], 0
      %s90 = sshll.u32 %s7, 4
      %s91 = int_to_ptr.hbm [resolvable:$true] %s90
      %s92 = sshll.u32 [#allocation11], 4
      %s93 = int_to_ptr.vmem [resolvable:$true] %s92
      %98 = dma.hbm_to_vmem [thread:$0]  %s91, 2048, %s93, [#allocation12], 64, 64, 4
    $region33: #{tpu_custom_call.1} parent=1 // pred_fallthru
      _
    // Predicated region
    $region34: #{tpu_custom_call.1} parent=1 // pred_check
      _
    $region35: #{tpu_custom_call.1} parent=1 // pred_check_branch
      %100 = sbr.rel (0) target = $region37
    $region36: #{tpu_custom_call.1} parent=1 // pred_region
      _
    $region37: #{tpu_custom_call.1} parent=1 // pred_fallthru
      _
    // Predicated region
    $region38: #{tpu_custom_call.1} parent=1 // pred_check
      _
    $region39: #{tpu_custom_call.1} parent=1 // pred_check_branch
      %102 = sbr.rel (0) target = $region41
    $region40: #{tpu_custom_call.1} parent=1 // pred_region
      %104 = vsyncadd [#allocation12], 0
      %s105 = sshll.u32 %s9, 4
      %s106 = int_to_ptr.hbm [resolvable:$true] %s105
      %s107 = sshll.u32 [#allocation13], 4
      %s108 = int_to_ptr.vmem [resolvable:$true] %s107
      %113 = dma.hbm_to_vmem [thread:$0]  %s106, 1024, %s108, [#allocation12], 64, 64, 4
    $region41: #{tpu_custom_call.1} parent=1 // pred_fallthru
      _
    // Predicated region
    $region42: #{tpu_custom_call.1} parent=1 // pred_check
      _
    $region43: #{tpu_custom_call.1} parent=1 // pred_check_branch
      %115 = sbr.rel (0) target = $region45
    $region44: #{tpu_custom_call.1} parent=1 // pred_region
      _
    $region45: #{tpu_custom_call.1} parent=1 // pred_fallthru
      _
    // Predicated region
    $region46: #{tpu_custom_call.1} parent=1 // pred_check
      _
    $region47: #{tpu_custom_call.1} parent=1 // pred_check_branch
      %117 = sbr.rel (0) target = $region49
    $region48: #{tpu_custom_call.1} parent=1 // pred_region
      %119 = dma.done [#allocation3], 512
    $region49: #{tpu_custom_call.1} parent=1 // pred_fallthru
      _
    // Predicated region
    $region50: #{tpu_custom_call.1} parent=1 // pred_check
      _
    $region51: #{tpu_custom_call.1} parent=1 // pred_check_branch
      %121 = sbr.rel (0) target = $region53
    $region52: #{tpu_custom_call.1} parent=1 // pred_region
      %123 = dma.done [#allocation6], 16384
    $region53: #{tpu_custom_call.1} parent=1 // pred_fallthru
      _
    // Predicated region
    $region54: #{tpu_custom_call.1} parent=1 // pred_check
      _
    $region55: #{tpu_custom_call.1} parent=1 // pred_check_branch
      %125 = sbr.rel (0) target = $region57
    $region56: #{tpu_custom_call.1} parent=1 // pred_region
      %127 = dma.done [#allocation6], 64
    $region57: #{tpu_custom_call.1} parent=1 // pred_fallthru
      _
    // Predicated region
    $region58: #{tpu_custom_call.1} parent=1 // pred_check
      _
    $region59: #{tpu_custom_call.1} parent=1 // pred_check_branch
      %129 = sbr.rel (0) target = $region61
    $region60: #{tpu_custom_call.1} parent=1 // pred_region
      %131 = dma.done [#allocation9], 8192
    $region61: #{tpu_custom_call.1} parent=1 // pred_fallthru
      _
    // Predicated region
    $region62: #{tpu_custom_call.1} parent=1 // pred_check
      _
    $region63: #{tpu_custom_call.1} parent=1 // pred_check_branch
      %133 = sbr.rel (0) target = $region65
    $region64: #{tpu_custom_call.1} parent=1 // pred_region
      %135 = dma.done [#allocation9], 4096
    $region65: #{tpu_custom_call.1} parent=1 // pred_fallthru
      _
    // Predicated region
    $region66: #{tpu_custom_call.1} parent=1 // pred_check
      _
    $region67: #{tpu_custom_call.1} parent=1 // pred_check_branch
      %137 = sbr.rel (0) target = $region69
    $region68: #{tpu_custom_call.1} parent=1 // pred_region
      %139 = dma.done [#allocation12], 2048
    $region69: #{tpu_custom_call.1} parent=1 // pred_fallthru
      _
    // Predicated region
    $region70: #{tpu_custom_call.1} parent=1 // pred_check
      _
    $region71: #{tpu_custom_call.1} parent=1 // pred_check_branch
      %141 = sbr.rel (0) target = $region73
    $region72: #{tpu_custom_call.1} parent=1 // pred_region
      %143 = dma.done [#allocation12], 1024
    $region73: #{tpu_custom_call.1} parent=1 // pred_fallthru
      _
    %v144 = vld [vmem:[#allocation2] sm:$0xff]
    %v145 = vld [vmem:[#allocation2 + $0x8] sm:$0xff]
    %v146 = vld [vmem:[#allocation2 + $0x10] sm:$0xff]
    %v147 = vld [vmem:[#allocation2 + $0x18] sm:$0xff]
    %v148 = vpack.c.bf16 %v144, %v144
    %v149 = vpack.c.bf16 %v145, %v145
    %v150 = vpack.c.bf16 %v146, %v146
    %v151 = vpack.c.bf16 %v147, %v147
    %v152 = vld [vmem:[#allocation5] sm:$0xff]
    %v153 = vld [vmem:[#allocation5 + $0x8] sm:$0xff]
    %v154 = vld [vmem:[#allocation5 + $0x10] sm:$0xff]
    %v155 = vld [vmem:[#allocation5 + $0x18] sm:$0xff]
    %v156 = vld [vmem:[#allocation5 + $0x20] sm:$0xff]
    %v157 = vld [vmem:[#allocation5 + $0x28] sm:$0xff]
    %v158 = vld [vmem:[#allocation5 + $0x30] sm:$0xff]
    %v159 = vld [vmem:[#allocation5 + $0x38] sm:$0xff]
    %v160 = vld [vmem:[#allocation5 + $0x40] sm:$0xff]
    %v161 = vld [vmem:[#allocation5 + $0x48] sm:$0xff]
    %v162 = vld [vmem:[#allocation5 + $0x50] sm:$0xff]
    %v163 = vld [vmem:[#allocation5 + $0x58] sm:$0xff]
    %v164 = vld [vmem:[#allocation5 + $0x60] sm:$0xff]
    %v165 = vld [vmem:[#allocation5 + $0x68] sm:$0xff]
    %v166 = vld [vmem:[#allocation5 + $0x70] sm:$0xff]
    %v167 = vld [vmem:[#allocation5 + $0x78] sm:$0xff]
    %v168 = vld [vmem:[#allocation5 + $0x80] sm:$0xff]
    %v169 = vld [vmem:[#allocation5 + $0x88] sm:$0xff]
    %v170 = vld [vmem:[#allocation5 + $0x90] sm:$0xff]
    %v171 = vld [vmem:[#allocation5 + $0x98] sm:$0xff]
    %v172 = vld [vmem:[#allocation5 + $0xa0] sm:$0xff]
    %v173 = vld [vmem:[#allocation5 + $0xa8] sm:$0xff]
    %v174 = vld [vmem:[#allocation5 + $0xb0] sm:$0xff]
    %v175 = vld [vmem:[#allocation5 + $0xb8] sm:$0xff]
    %v176 = vld [vmem:[#allocation5 + $0xc0] sm:$0xff]
    %v177 = vld [vmem:[#allocation5 + $0xc8] sm:$0xff]
    %v178 = vld [vmem:[#allocation5 + $0xd0] sm:$0xff]
    %v179 = vld [vmem:[#allocation5 + $0xd8] sm:$0xff]
    %v180 = vld [vmem:[#allocation5 + $0xe0] sm:$0xff]
    %v181 = vld [vmem:[#allocation5 + $0xe8] sm:$0xff]
    %v182 = vld [vmem:[#allocation5 + $0xf0] sm:$0xff]
    %v183 = vld [vmem:[#allocation5 + $0xf8] sm:$0xff]
    %v184 = vld [vmem:[#allocation5 + $0x100] sm:$0xff]
    %v185 = vld [vmem:[#allocation5 + $0x108] sm:$0xff]
    %v186 = vld [vmem:[#allocation5 + $0x110] sm:$0xff]
    %v187 = vld [vmem:[#allocation5 + $0x118] sm:$0xff]
    %v188 = vld [vmem:[#allocation5 + $0x120] sm:$0xff]
    %v189 = vld [vmem:[#allocation5 + $0x128] sm:$0xff]
    %v190 = vld [vmem:[#allocation5 + $0x130] sm:$0xff]
    %v191 = vld [vmem:[#allocation5 + $0x138] sm:$0xff]
    %v192 = vld [vmem:[#allocation5 + $0x140] sm:$0xff]
    %v193 = vld [vmem:[#allocation5 + $0x148] sm:$0xff]
    %v194 = vld [vmem:[#allocation5 + $0x150] sm:$0xff]
    %v195 = vld [vmem:[#allocation5 + $0x158] sm:$0xff]
    %v196 = vld [vmem:[#allocation5 + $0x160] sm:$0xff]
    %v197 = vld [vmem:[#allocation5 + $0x168] sm:$0xff]
    %v198 = vld [vmem:[#allocation5 + $0x170] sm:$0xff]
    %v199 = vld [vmem:[#allocation5 + $0x178] sm:$0xff]
    %v200 = vld [vmem:[#allocation5 + $0x180] sm:$0xff]
    %v201 = vld [vmem:[#allocation5 + $0x188] sm:$0xff]
    %v202 = vld [vmem:[#allocation5 + $0x190] sm:$0xff]
    %v203 = vld [vmem:[#allocation5 + $0x198] sm:$0xff]
    %v204 = vld [vmem:[#allocation5 + $0x1a0] sm:$0xff]
    %v205 = vld [vmem:[#allocation5 + $0x1a8] sm:$0xff]
    %v206 = vld [vmem:[#allocation5 + $0x1b0] sm:$0xff]
    %v207 = vld [vmem:[#allocation5 + $0x1b8] sm:$0xff]
    %v208 = vld [vmem:[#allocation5 + $0x1c0] sm:$0xff]
    %v209 = vld [vmem:[#allocation5 + $0x1c8] sm:$0xff]
    %v210 = vld [vmem:[#allocation5 + $0x1d0] sm:$0xff]
    %v211 = vld [vmem:[#allocation5 + $0x1d8] sm:$0xff]
    %v212 = vld [vmem:[#allocation5 + $0x1e0] sm:$0xff]
    %v213 = vld [vmem:[#allocation5 + $0x1e8] sm:$0xff]
    %v214 = vld [vmem:[#allocation5 + $0x1f0] sm:$0xff]
    %v215 = vld [vmem:[#allocation5 + $0x1f8] sm:$0xff]
    %v216 = vld [vmem:[#allocation5 + $0x200] sm:$0xff]
    %v217 = vld [vmem:[#allocation5 + $0x208] sm:$0xff]
    %v218 = vld [vmem:[#allocation5 + $0x210] sm:$0xff]
    %v219 = vld [vmem:[#allocation5 + $0x218] sm:$0xff]
    %v220 = vld [vmem:[#allocation5 + $0x220] sm:$0xff]
    %v221 = vld [vmem:[#allocation5 + $0x228] sm:$0xff]
    %v222 = vld [vmem:[#allocation5 + $0x230] sm:$0xff]
    %v223 = vld [vmem:[#allocation5 + $0x238] sm:$0xff]
    %v224 = vld [vmem:[#allocation5 + $0x240] sm:$0xff]
    %v225 = vld [vmem:[#allocation5 + $0x248] sm:$0xff]
    %v226 = vld [vmem:[#allocation5 + $0x250] sm:$0xff]
    %v227 = vld [vmem:[#allocation5 + $0x258] sm:$0xff]
    %v228 = vld [vmem:[#allocation5 + $0x260] sm:$0xff]
    %v229 = vld [vmem:[#allocation5 + $0x268] sm:$0xff]
    %v230 = vld [vmem:[#allocation5 + $0x270] sm:$0xff]
    %v231 = vld [vmem:[#allocation5 + $0x278] sm:$0xff]
    %v232 = vld [vmem:[#allocation5 + $0x280] sm:$0xff]
    %v233 = vld [vmem:[#allocation5 + $0x288] sm:$0xff]
    %v234 = vld [vmem:[#allocation5 + $0x290] sm:$0xff]
    %v235 = vld [vmem:[#allocation5 + $0x298] sm:$0xff]
    %v236 = vld [vmem:[#allocation5 + $0x2a0] sm:$0xff]
    %v237 = vld [vmem:[#allocation5 + $0x2a8] sm:$0xff]
    %v238 = vld [vmem:[#allocation5 + $0x2b0] sm:$0xff]
    %v239 = vld [vmem:[#allocation5 + $0x2b8] sm:$0xff]
    %v240 = vld [vmem:[#allocation5 + $0x2c0] sm:$0xff]
    %v241 = vld [vmem:[#allocation5 + $0x2c8] sm:$0xff]
    %v242 = vld [vmem:[#allocation5 + $0x2d0] sm:$0xff]
    %v243 = vld [vmem:[#allocation5 + $0x2d8] sm:$0xff]
    %v244 = vld [vmem:[#allocation5 + $0x2e0] sm:$0xff]
    %v245 = vld [vmem:[#allocation5 + $0x2e8] sm:$0xff]
    %v246 = vld [vmem:[#allocation5 + $0x2f0] sm:$0xff]
    %v247 = vld [vmem:[#allocation5 + $0x2f8] sm:$0xff]
    %v248 = vld [vmem:[#allocation5 + $0x300] sm:$0xff]
    %v249 = vld [vmem:[#allocation5 + $0x308] sm:$0xff]
    %v250 = vld [vmem:[#allocation5 + $0x310] sm:$0xff]
    %v251 = vld [vmem:[#allocation5 + $0x318] sm:$0xff]
    %v252 = vld [vmem:[#allocation5 + $0x320] sm:$0xff]
    %v253 = vld [vmem:[#allocation5 + $0x328] sm:$0xff]
    %v254 = vld [vmem:[#allocation5 + $0x330] sm:$0xff]
    %v255 = vld [vmem:[#allocation5 + $0x338] sm:$0xff]
    %v256 = vld [vmem:[#allocation5 + $0x340] sm:$0xff]
    %v257 = vld [vmem:[#allocation5 + $0x348] sm:$0xff]
    %v258 = vld [vmem:[#allocation5 + $0x350] sm:$0xff]
    %v259 = vld [vmem:[#allocation5 + $0x358] sm:$0xff]
    %v260 = vld [vmem:[#allocation5 + $0x360] sm:$0xff]
    %v261 = vld [vmem:[#allocation5 + $0x368] sm:$0xff]
    %v262 = vld [vmem:[#allocation5 + $0x370] sm:$0xff]
    %v263 = vld [vmem:[#allocation5 + $0x378] sm:$0xff]
    %v264 = vld [vmem:[#allocation5 + $0x380] sm:$0xff]
    %v265 = vld [vmem:[#allocation5 + $0x388] sm:$0xff]
    %v266 = vld [vmem:[#allocation5 + $0x390] sm:$0xff]
    %v267 = vld [vmem:[#allocation5 + $0x398] sm:$0xff]
    %v268 = vld [vmem:[#allocation5 + $0x3a0] sm:$0xff]
    %v269 = vld [vmem:[#allocation5 + $0x3a8] sm:$0xff]
    %v270 = vld [vmem:[#allocation5 + $0x3b0] sm:$0xff]
    %v271 = vld [vmem:[#allocation5 + $0x3b8] sm:$0xff]
    %v272 = vld [vmem:[#allocation5 + $0x3c0] sm:$0xff]
    %v273 = vld [vmem:[#allocation5 + $0x3c8] sm:$0xff]
    %v274 = vld [vmem:[#allocation5 + $0x3d0] sm:$0xff]
    %v275 = vld [vmem:[#allocation5 + $0x3d8] sm:$0xff]
    %v276 = vld [vmem:[#allocation5 + $0x3e0] sm:$0xff]
    %v277 = vld [vmem:[#allocation5 + $0x3e8] sm:$0xff]
    %v278 = vld [vmem:[#allocation5 + $0x3f0] sm:$0xff]
    %v279 = vld [vmem:[#allocation5 + $0x3f8] sm:$0xff]
    %v280 = vld [vmem:[#allocation7] sm:$0xf]
    %v282 = vperm.slane %v280, 0
    %v283 = vperm.slane %v280, 1
    %v284 = vperm.slane %v280, 2
    %v285 = vperm.slane %v280, 3
    %v418 = vunpack.c.l.b16 %v152
    %v419 = vunpack.c.h.b16 %v152
    %v420 = vunpack.c.l.b16 %v153
    %v421 = vunpack.c.h.b16 %v153
    %v422 = vunpack.c.l.b16 %v154
    %v423 = vunpack.c.h.b16 %v154
    %v424 = vunpack.c.l.b16 %v155
    %v425 = vunpack.c.h.b16 %v155
    %v426 = vunpack.c.l.b16 %v156
    %v427 = vunpack.c.h.b16 %v156
    %v428 = vunpack.c.l.b16 %v157
    %v429 = vunpack.c.h.b16 %v157
    %v430 = vunpack.c.l.b16 %v158
    %v431 = vunpack.c.h.b16 %v158
    %v432 = vunpack.c.l.b16 %v159
    %v433 = vunpack.c.h.b16 %v159
    %v434 = vunpack.c.l.b16 %v160
    %v435 = vunpack.c.h.b16 %v160
    %v436 = vunpack.c.l.b16 %v161
    %v437 = vunpack.c.h.b16 %v161
    %v438 = vunpack.c.l.b16 %v162
    %v439 = vunpack.c.h.b16 %v162
    %v440 = vunpack.c.l.b16 %v163
    %v441 = vunpack.c.h.b16 %v163
    %v442 = vunpack.c.l.b16 %v164
    %v443 = vunpack.c.h.b16 %v164
    %v444 = vunpack.c.l.b16 %v165
    %v445 = vunpack.c.h.b16 %v165
    %v446 = vunpack.c.l.b16 %v166
    %v447 = vunpack.c.h.b16 %v166
    %v448 = vunpack.c.l.b16 %v167
    %v449 = vunpack.c.h.b16 %v167
    %v450 = vunpack.c.l.b16 %v168
    %v451 = vunpack.c.h.b16 %v168
    %v452 = vunpack.c.l.b16 %v169
    %v453 = vunpack.c.h.b16 %v169
    %v454 = vunpack.c.l.b16 %v170
    %v455 = vunpack.c.h.b16 %v170
    %v456 = vunpack.c.l.b16 %v171
    %v457 = vunpack.c.h.b16 %v171
    %v458 = vunpack.c.l.b16 %v172
    %v459 = vunpack.c.h.b16 %v172
    %v460 = vunpack.c.l.b16 %v173
    %v461 = vunpack.c.h.b16 %v173
    %v462 = vunpack.c.l.b16 %v174
    %v463 = vunpack.c.h.b16 %v174
    %v464 = vunpack.c.l.b16 %v175
    %v465 = vunpack.c.h.b16 %v175
    %v466 = vunpack.c.l.b16 %v176
    %v467 = vunpack.c.h.b16 %v176
    %v468 = vunpack.c.l.b16 %v177
    %v469 = vunpack.c.h.b16 %v177
    %v470 = vunpack.c.l.b16 %v178
    %v471 = vunpack.c.h.b16 %v178
    %v472 = vunpack.c.l.b16 %v179
    %v473 = vunpack.c.h.b16 %v179
    %v474 = vunpack.c.l.b16 %v180
    %v475 = vunpack.c.h.b16 %v180
    %v476 = vunpack.c.l.b16 %v181
    %v477 = vunpack.c.h.b16 %v181
    %v478 = vunpack.c.l.b16 %v182
    %v479 = vunpack.c.h.b16 %v182
    %v480 = vunpack.c.l.b16 %v183
    %v481 = vunpack.c.h.b16 %v183
    %v482 = vunpack.c.l.b16 %v184
    %v483 = vunpack.c.h.b16 %v184
    %v484 = vunpack.c.l.b16 %v185
    %v485 = vunpack.c.h.b16 %v185
    %v486 = vunpack.c.l.b16 %v186
    %v487 = vunpack.c.h.b16 %v186
    %v488 = vunpack.c.l.b16 %v187
    %v489 = vunpack.c.h.b16 %v187
    %v490 = vunpack.c.l.b16 %v188
    %v491 = vunpack.c.h.b16 %v188
    %v492 = vunpack.c.l.b16 %v189
    %v493 = vunpack.c.h.b16 %v189
    %v494 = vunpack.c.l.b16 %v190
    %v495 = vunpack.c.h.b16 %v190
    %v496 = vunpack.c.l.b16 %v191
    %v497 = vunpack.c.h.b16 %v191
    %v498 = vunpack.c.l.b16 %v192
    %v499 = vunpack.c.h.b16 %v192
    %v500 = vunpack.c.l.b16 %v193
    %v501 = vunpack.c.h.b16 %v193
    %v502 = vunpack.c.l.b16 %v194
    %v503 = vunpack.c.h.b16 %v194
    %v504 = vunpack.c.l.b16 %v195
    %v505 = vunpack.c.h.b16 %v195
    %v506 = vunpack.c.l.b16 %v196
    %v507 = vunpack.c.h.b16 %v196
    %v508 = vunpack.c.l.b16 %v197
    %v509 = vunpack.c.h.b16 %v197
    %v510 = vunpack.c.l.b16 %v198
    %v511 = vunpack.c.h.b16 %v198
    %v512 = vunpack.c.l.b16 %v199
    %v513 = vunpack.c.h.b16 %v199
    %v514 = vunpack.c.l.b16 %v200
    %v515 = vunpack.c.h.b16 %v200
    %v516 = vunpack.c.l.b16 %v201
    %v517 = vunpack.c.h.b16 %v201
    %v518 = vunpack.c.l.b16 %v202
    %v519 = vunpack.c.h.b16 %v202
    %v520 = vunpack.c.l.b16 %v203
    %v521 = vunpack.c.h.b16 %v203
    %v522 = vunpack.c.l.b16 %v204
    %v523 = vunpack.c.h.b16 %v204
    %v524 = vunpack.c.l.b16 %v205
    %v525 = vunpack.c.h.b16 %v205
    %v526 = vunpack.c.l.b16 %v206
    %v527 = vunpack.c.h.b16 %v206
    %v528 = vunpack.c.l.b16 %v207
    %v529 = vunpack.c.h.b16 %v207
    %v530 = vunpack.c.l.b16 %v208
    %v531 = vunpack.c.h.b16 %v208
    %v532 = vunpack.c.l.b16 %v209
    %v533 = vunpack.c.h.b16 %v209
    %v534 = vunpack.c.l.b16 %v210
    %v535 = vunpack.c.h.b16 %v210
    %v536 = vunpack.c.l.b16 %v211
    %v537 = vunpack.c.h.b16 %v211
    %v538 = vunpack.c.l.b16 %v212
    %v539 = vunpack.c.h.b16 %v212
    %v540 = vunpack.c.l.b16 %v213
    %v541 = vunpack.c.h.b16 %v213
    %v542 = vunpack.c.l.b16 %v214
    %v543 = vunpack.c.h.b16 %v214
    %v544 = vunpack.c.l.b16 %v215
    %v545 = vunpack.c.h.b16 %v215
    %v546 = vunpack.c.l.b16 %v216
    %v547 = vunpack.c.h.b16 %v216
    %v548 = vunpack.c.l.b16 %v217
    %v549 = vunpack.c.h.b16 %v217
    %v550 = vunpack.c.l.b16 %v218
    %v551 = vunpack.c.h.b16 %v218
    %v552 = vunpack.c.l.b16 %v219
    %v553 = vunpack.c.h.b16 %v219
    %v554 = vunpack.c.l.b16 %v220
    %v555 = vunpack.c.h.b16 %v220
    %v556 = vunpack.c.l.b16 %v221
    %v557 = vunpack.c.h.b16 %v221
    %v558 = vunpack.c.l.b16 %v222
    %v559 = vunpack.c.h.b16 %v222
    %v560 = vunpack.c.l.b16 %v223
    %v561 = vunpack.c.h.b16 %v223
    %v562 = vunpack.c.l.b16 %v224
    %v563 = vunpack.c.h.b16 %v224
    %v564 = vunpack.c.l.b16 %v225
    %v565 = vunpack.c.h.b16 %v225
    %v566 = vunpack.c.l.b16 %v226
    %v567 = vunpack.c.h.b16 %v226
    %v568 = vunpack.c.l.b16 %v227
    %v569 = vunpack.c.h.b16 %v227
    %v570 = vunpack.c.l.b16 %v228
    %v571 = vunpack.c.h.b16 %v228
    %v572 = vunpack.c.l.b16 %v229
    %v573 = vunpack.c.h.b16 %v229
    %v574 = vunpack.c.l.b16 %v230
    %v575 = vunpack.c.h.b16 %v230
    %v576 = vunpack.c.l.b16 %v231
    %v577 = vunpack.c.h.b16 %v231
    %v578 = vunpack.c.l.b16 %v232
    %v579 = vunpack.c.h.b16 %v232
    %v580 = vunpack.c.l.b16 %v233
    %v581 = vunpack.c.h.b16 %v233
    %v582 = vunpack.c.l.b16 %v234
    %v583 = vunpack.c.h.b16 %v234
    %v584 = vunpack.c.l.b16 %v235
    %v585 = vunpack.c.h.b16 %v235
    %v586 = vunpack.c.l.b16 %v236
    %v587 = vunpack.c.h.b16 %v236
    %v588 = vunpack.c.l.b16 %v237
    %v589 = vunpack.c.h.b16 %v237
    %v590 = vunpack.c.l.b16 %v238
    %v591 = vunpack.c.h.b16 %v238
    %v592 = vunpack.c.l.b16 %v239
    %v593 = vunpack.c.h.b16 %v239
    %v594 = vunpack.c.l.b16 %v240
    %v595 = vunpack.c.h.b16 %v240
    %v596 = vunpack.c.l.b16 %v241
    %v597 = vunpack.c.h.b16 %v241
    %v598 = vunpack.c.l.b16 %v242
    %v599 = vunpack.c.h.b16 %v242
    %v600 = vunpack.c.l.b16 %v243
    %v601 = vunpack.c.h.b16 %v243
    %v602 = vunpack.c.l.b16 %v244
    %v603 = vunpack.c.h.b16 %v244
    %v604 = vunpack.c.l.b16 %v245
    %v605 = vunpack.c.h.b16 %v245
    %v606 = vunpack.c.l.b16 %v246
    %v607 = vunpack.c.h.b16 %v246
    %v608 = vunpack.c.l.b16 %v247
    %v609 = vunpack.c.h.b16 %v247
    %v610 = vunpack.c.l.b16 %v248
    %v611 = vunpack.c.h.b16 %v248
    %v612 = vunpack.c.l.b16 %v249
    %v613 = vunpack.c.h.b16 %v249
    %v614 = vunpack.c.l.b16 %v250
    %v615 = vunpack.c.h.b16 %v250
    %v616 = vunpack.c.l.b16 %v251
    %v617 = vunpack.c.h.b16 %v251
    %v618 = vunpack.c.l.b16 %v252
    %v619 = vunpack.c.h.b16 %v252
    %v620 = vunpack.c.l.b16 %v253
    %v621 = vunpack.c.h.b16 %v253
    %v622 = vunpack.c.l.b16 %v254
    %v623 = vunpack.c.h.b16 %v254
    %v624 = vunpack.c.l.b16 %v255
    %v625 = vunpack.c.h.b16 %v255
    %v626 = vunpack.c.l.b16 %v256
    %v627 = vunpack.c.h.b16 %v256
    %v628 = vunpack.c.l.b16 %v257
    %v629 = vunpack.c.h.b16 %v257
    %v630 = vunpack.c.l.b16 %v258
    %v631 = vunpack.c.h.b16 %v258
    %v632 = vunpack.c.l.b16 %v259
    %v633 = vunpack.c.h.b16 %v259
    %v634 = vunpack.c.l.b16 %v260
    %v635 = vunpack.c.h.b16 %v260
    %v636 = vunpack.c.l.b16 %v261
    %v637 = vunpack.c.h.b16 %v261
    %v638 = vunpack.c.l.b16 %v262
    %v639 = vunpack.c.h.b16 %v262
    %v640 = vunpack.c.l.b16 %v263
    %v641 = vunpack.c.h.b16 %v263
    %v642 = vunpack.c.l.b16 %v264
    %v643 = vunpack.c.h.b16 %v264
    %v644 = vunpack.c.l.b16 %v265
    %v645 = vunpack.c.h.b16 %v265
    %v646 = vunpack.c.l.b16 %v266
    %v647 = vunpack.c.h.b16 %v266
    %v648 = vunpack.c.l.b16 %v267
    %v649 = vunpack.c.h.b16 %v267
    %v650 = vunpack.c.l.b16 %v268
    %v651 = vunpack.c.h.b16 %v268
    %v652 = vunpack.c.l.b16 %v269
    %v653 = vunpack.c.h.b16 %v269
    %v654 = vunpack.c.l.b16 %v270
    %v655 = vunpack.c.h.b16 %v270
    %v656 = vunpack.c.l.b16 %v271
    %v657 = vunpack.c.h.b16 %v271
    %v658 = vunpack.c.l.b16 %v272
    %v659 = vunpack.c.h.b16 %v272
    %v660 = vunpack.c.l.b16 %v273
    %v661 = vunpack.c.h.b16 %v273
    %v662 = vunpack.c.l.b16 %v274
    %v663 = vunpack.c.h.b16 %v274
    %v664 = vunpack.c.l.b16 %v275
    %v665 = vunpack.c.h.b16 %v275
    %v666 = vunpack.c.l.b16 %v276
    %v667 = vunpack.c.h.b16 %v276
    %v668 = vunpack.c.l.b16 %v277
    %v669 = vunpack.c.h.b16 %v277
    %v670 = vunpack.c.l.b16 %v278
    %v671 = vunpack.c.h.b16 %v278
    %v672 = vunpack.c.l.b16 %v279
    %v673 = vunpack.c.h.b16 %v279
    %v674 = vpack.c.b16 %v422, %v418
    %v675 = vpack.c.b16 %v423, %v419
    %v676 = vpack.c.b16 %v424, %v420
    %v677 = vpack.c.b16 %v425, %v421
    %v678 = vpack.c.b16 %v430, %v426
    %v679 = vpack.c.b16 %v431, %v427
    %v680 = vpack.c.b16 %v432, %v428
    %v681 = vpack.c.b16 %v433, %v429
    %v682 = vpack.c.b16 %v438, %v434
    %v683 = vpack.c.b16 %v439, %v435
    %v684 = vpack.c.b16 %v440, %v436
    %v685 = vpack.c.b16 %v441, %v437
    %v686 = vpack.c.b16 %v446, %v442
    %v687 = vpack.c.b16 %v447, %v443
    %v688 = vpack.c.b16 %v448, %v444
    %v689 = vpack.c.b16 %v449, %v445
    %v690 = vpack.c.b16 %v454, %v450
    %v691 = vpack.c.b16 %v455, %v451
    %v692 = vpack.c.b16 %v456, %v452
    %v693 = vpack.c.b16 %v457, %v453
    %v694 = vpack.c.b16 %v462, %v458
    %v695 = vpack.c.b16 %v463, %v459
    %v696 = vpack.c.b16 %v464, %v460
    %v697 = vpack.c.b16 %v465, %v461
    %v698 = vpack.c.b16 %v470, %v466
    %v699 = vpack.c.b16 %v471, %v467
    %v700 = vpack.c.b16 %v472, %v468
    %v701 = vpack.c.b16 %v473, %v469
    %v702 = vpack.c.b16 %v478, %v474
    %v703 = vpack.c.b16 %v479, %v475
    %v704 = vpack.c.b16 %v480, %v476
    %v705 = vpack.c.b16 %v481, %v477
    %v706 = vpack.c.b16 %v486, %v482
    %v707 = vpack.c.b16 %v487, %v483
    %v708 = vpack.c.b16 %v488, %v484
    %v709 = vpack.c.b16 %v489, %v485
    %v710 = vpack.c.b16 %v494, %v490
    %v711 = vpack.c.b16 %v495, %v491
    %v712 = vpack.c.b16 %v496, %v492
    %v713 = vpack.c.b16 %v497, %v493
    %v714 = vpack.c.b16 %v502, %v498
    %v715 = vpack.c.b16 %v503, %v499
    %v716 = vpack.c.b16 %v504, %v500
    %v717 = vpack.c.b16 %v505, %v501
    %v718 = vpack.c.b16 %v510, %v506
    %v719 = vpack.c.b16 %v511, %v507
    %v720 = vpack.c.b16 %v512, %v508
    %v721 = vpack.c.b16 %v513, %v509
    %v722 = vpack.c.b16 %v518, %v514
    %v723 = vpack.c.b16 %v519, %v515
    %v724 = vpack.c.b16 %v520, %v516
    %v725 = vpack.c.b16 %v521, %v517
    %v726 = vpack.c.b16 %v526, %v522
    %v727 = vpack.c.b16 %v527, %v523
    %v728 = vpack.c.b16 %v528, %v524
    %v729 = vpack.c.b16 %v529, %v525
    %v730 = vpack.c.b16 %v534, %v530
    %v731 = vpack.c.b16 %v535, %v531
    %v732 = vpack.c.b16 %v536, %v532
    %v733 = vpack.c.b16 %v537, %v533
    %v734 = vpack.c.b16 %v542, %v538
    %v735 = vpack.c.b16 %v543, %v539
    %v736 = vpack.c.b16 %v544, %v540
    %v737 = vpack.c.b16 %v545, %v541
    %v738 = vpack.c.b16 %v550, %v546
    %v739 = vpack.c.b16 %v551, %v547
    %v740 = vpack.c.b16 %v552, %v548
    %v741 = vpack.c.b16 %v553, %v549
    %v742 = vpack.c.b16 %v558, %v554
    %v743 = vpack.c.b16 %v559, %v555
    %v744 = vpack.c.b16 %v560, %v556
    %v745 = vpack.c.b16 %v561, %v557
    %v746 = vpack.c.b16 %v566, %v562
    %v747 = vpack.c.b16 %v567, %v563
    %v748 = vpack.c.b16 %v568, %v564
    %v749 = vpack.c.b16 %v569, %v565
    %v750 = vpack.c.b16 %v574, %v570
    %v751 = vpack.c.b16 %v575, %v571
    %v752 = vpack.c.b16 %v576, %v572
    %v753 = vpack.c.b16 %v577, %v573
    %v754 = vpack.c.b16 %v582, %v578
    %v755 = vpack.c.b16 %v583, %v579
    %v756 = vpack.c.b16 %v584, %v580
    %v757 = vpack.c.b16 %v585, %v581
    %v758 = vpack.c.b16 %v590, %v586
    %v759 = vpack.c.b16 %v591, %v587
    %v760 = vpack.c.b16 %v592, %v588
    %v761 = vpack.c.b16 %v593, %v589
    %v762 = vpack.c.b16 %v598, %v594
    %v763 = vpack.c.b16 %v599, %v595
    %v764 = vpack.c.b16 %v600, %v596
    %v765 = vpack.c.b16 %v601, %v597
    %v766 = vpack.c.b16 %v606, %v602
    %v767 = vpack.c.b16 %v607, %v603
    %v768 = vpack.c.b16 %v608, %v604
    %v769 = vpack.c.b16 %v609, %v605
    %v770 = vpack.c.b16 %v614, %v610
    %v771 = vpack.c.b16 %v615, %v611
    %v772 = vpack.c.b16 %v616, %v612
    %v773 = vpack.c.b16 %v617, %v613
    %v774 = vpack.c.b16 %v622, %v618
    %v775 = vpack.c.b16 %v623, %v619
    %v776 = vpack.c.b16 %v624, %v620
    %v777 = vpack.c.b16 %v625, %v621
    %v778 = vpack.c.b16 %v630, %v626
    %v779 = vpack.c.b16 %v631, %v627
    %v780 = vpack.c.b16 %v632, %v628
    %v781 = vpack.c.b16 %v633, %v629
    %v782 = vpack.c.b16 %v638, %v634
    %v783 = vpack.c.b16 %v639, %v635
    %v784 = vpack.c.b16 %v640, %v636
    %v785 = vpack.c.b16 %v641, %v637
    %v786 = vpack.c.b16 %v646, %v642
    %v787 = vpack.c.b16 %v647, %v643
    %v788 = vpack.c.b16 %v648, %v644
    %v789 = vpack.c.b16 %v649, %v645
    %v790 = vpack.c.b16 %v654, %v650
    %v791 = vpack.c.b16 %v655, %v651
    %v792 = vpack.c.b16 %v656, %v652
    %v793 = vpack.c.b16 %v657, %v653
    %v794 = vpack.c.b16 %v662, %v658
    %v795 = vpack.c.b16 %v663, %v659
    %v796 = vpack.c.b16 %v664, %v660
    %v797 = vpack.c.b16 %v665, %v661
    %v798 = vpack.c.b16 %v670, %v666
    %v799 = vpack.c.b16 %v671, %v667
    %v800 = vpack.c.b16 %v672, %v668
    %v801 = vpack.c.b16 %v673, %v669
    %930 = vmatpush.bf16.msra.mxu0 %v702
    %931 = vmatpush.bf16.msra.mxu0 %v698
    %932 = vmatpush.bf16.msra.mxu0 %v694
    %933 = vmatpush.bf16.msra.mxu0 %v690
    %934 = vmatpush.bf16.msra.mxu0 %v686
    %935 = vmatpush.bf16.msra.mxu0 %v682
    %936 = vmatpush.bf16.msra.mxu0 %v678
    %937 = vmatpush.bf16.msra.mxu0 %v674
    %938 = vmatmul.bf16.gmra.mxu0 %v148
    %v939 = vpop.f32.mrf.mxu0
    %v940 = vadd.f32 %v282, %v939
    %v941 = vpop.f32.mrf.mxu0
    %942 = vdwg.mxu0
    %943 = vmatpush.bf16.msra.mxu0 %v734
    %944 = vmatpush.bf16.msra.mxu0 %v730
    %945 = vmatpush.bf16.msra.mxu0 %v726
    %946 = vmatpush.bf16.msra.mxu0 %v722
    %947 = vmatpush.bf16.msra.mxu0 %v718
    %948 = vmatpush.bf16.msra.mxu0 %v714
    %949 = vmatpush.bf16.msra.mxu0 %v710
    %950 = vmatpush.bf16.msra.mxu0 %v706
    %951 = vmatmul.bf16.gmra.mxu0 %v149
    %v952 = vpop.f32.mrf.mxu0
    %v953 = vadd.f32 %v940, %v952
    %v954 = vpop.f32.mrf.mxu0
    %955 = vdwg.mxu0
    %956 = vmatpush.bf16.msra.mxu0 %v766
    %957 = vmatpush.bf16.msra.mxu0 %v762
    %958 = vmatpush.bf16.msra.mxu0 %v758
    %959 = vmatpush.bf16.msra.mxu0 %v754
    %960 = vmatpush.bf16.msra.mxu0 %v750
    %961 = vmatpush.bf16.msra.mxu0 %v746
    %962 = vmatpush.bf16.msra.mxu0 %v742
    %963 = vmatpush.bf16.msra.mxu0 %v738
    %964 = vmatmul.bf16.gmra.mxu0 %v150
    %v965 = vpop.f32.mrf.mxu0
    %v966 = vadd.f32 %v953, %v965
    %v967 = vpop.f32.mrf.mxu0
    %968 = vdwg.mxu0
    %969 = vmatpush.bf16.msra.mxu0 %v798
    %970 = vmatpush.bf16.msra.mxu0 %v794
    %971 = vmatpush.bf16.msra.mxu0 %v790
    %972 = vmatpush.bf16.msra.mxu0 %v786
    %973 = vmatpush.bf16.msra.mxu0 %v782
    %974 = vmatpush.bf16.msra.mxu0 %v778
    %975 = vmatpush.bf16.msra.mxu0 %v774
    %976 = vmatpush.bf16.msra.mxu0 %v770
    %977 = vmatmul.bf16.gmra.mxu0 %v151
    %v978 = vpop.f32.mrf.mxu0
    %v979 = vadd.f32 %v966, %v978
    %v980 = vpop.f32.mrf.mxu0
    %981 = vdwg.mxu0
    %982 = vmatpush.bf16.msra.mxu0 %v703
    %983 = vmatpush.bf16.msra.mxu0 %v699
    %984 = vmatpush.bf16.msra.mxu0 %v695
    %985 = vmatpush.bf16.msra.mxu0 %v691
    %986 = vmatpush.bf16.msra.mxu0 %v687
    %987 = vmatpush.bf16.msra.mxu0 %v683
    %988 = vmatpush.bf16.msra.mxu0 %v679
    %989 = vmatpush.bf16.msra.mxu0 %v675
    %990 = vmatmul.bf16.gmra.mxu0 %v148
    %v991 = vpop.f32.mrf.mxu0
    %v992 = vadd.f32 %v283, %v991
    %v993 = vpop.f32.mrf.mxu0
    %994 = vdwg.mxu0
    %995 = vmatpush.bf16.msra.mxu0 %v735
    %996 = vmatpush.bf16.msra.mxu0 %v731
    %997 = vmatpush.bf16.msra.mxu0 %v727
    %998 = vmatpush.bf16.msra.mxu0 %v723
    %999 = vmatpush.bf16.msra.mxu0 %v719
    %1000 = vmatpush.bf16.msra.mxu0 %v715
    %1001 = vmatpush.bf16.msra.mxu0 %v711
    %1002 = vmatpush.bf16.msra.mxu0 %v707
    %1003 = vmatmul.bf16.gmra.mxu0 %v149
    %v1004 = vpop.f32.mrf.mxu0
    %v1005 = vadd.f32 %v992, %v1004
    %v1006 = vpop.f32.mrf.mxu0
    %1007 = vdwg.mxu0
    %1008 = vmatpush.bf16.msra.mxu0 %v767
    %1009 = vmatpush.bf16.msra.mxu0 %v763
    %1010 = vmatpush.bf16.msra.mxu0 %v759
    %1011 = vmatpush.bf16.msra.mxu0 %v755
    %1012 = vmatpush.bf16.msra.mxu0 %v751
    %1013 = vmatpush.bf16.msra.mxu0 %v747
    %1014 = vmatpush.bf16.msra.mxu0 %v743
    %1015 = vmatpush.bf16.msra.mxu0 %v739
    %1016 = vmatmul.bf16.gmra.mxu0 %v150
    %v1017 = vpop.f32.mrf.mxu0
    %v1018 = vadd.f32 %v1005, %v1017
    %v1019 = vpop.f32.mrf.mxu0
    %1020 = vdwg.mxu0
    %1021 = vmatpush.bf16.msra.mxu0 %v799
    %1022 = vmatpush.bf16.msra.mxu0 %v795
    %1023 = vmatpush.bf16.msra.mxu0 %v791
    %1024 = vmatpush.bf16.msra.mxu0 %v787
    %1025 = vmatpush.bf16.msra.mxu0 %v783
    %1026 = vmatpush.bf16.msra.mxu0 %v779
    %1027 = vmatpush.bf16.msra.mxu0 %v775
    %1028 = vmatpush.bf16.msra.mxu0 %v771
    %1029 = vmatmul.bf16.gmra.mxu0 %v151
    %v1030 = vpop.f32.mrf.mxu0
    %v1031 = vadd.f32 %v1018, %v1030
    %v1032 = vpop.f32.mrf.mxu0
    %1033 = vdwg.mxu0
    %1034 = vmatpush.bf16.msra.mxu0 %v704
    %1035 = vmatpush.bf16.msra.mxu0 %v700
    %1036 = vmatpush.bf16.msra.mxu0 %v696
    %1037 = vmatpush.bf16.msra.mxu0 %v692
    %1038 = vmatpush.bf16.msra.mxu0 %v688
    %1039 = vmatpush.bf16.msra.mxu0 %v684
    %1040 = vmatpush.bf16.msra.mxu0 %v680
    %1041 = vmatpush.bf16.msra.mxu0 %v676
    %1042 = vmatmul.bf16.gmra.mxu0 %v148
    %v1043 = vpop.f32.mrf.mxu0
    %v1044 = vadd.f32 %v284, %v1043
    %v1045 = vpop.f32.mrf.mxu0
    %1046 = vdwg.mxu0
    %1047 = vmatpush.bf16.msra.mxu0 %v736
    %1048 = vmatpush.bf16.msra.mxu0 %v732
    %1049 = vmatpush.bf16.msra.mxu0 %v728
    %1050 = vmatpush.bf16.msra.mxu0 %v724
    %1051 = vmatpush.bf16.msra.mxu0 %v720
    %1052 = vmatpush.bf16.msra.mxu0 %v716
    %1053 = vmatpush.bf16.msra.mxu0 %v712
    %1054 = vmatpush.bf16.msra.mxu0 %v708
    %1055 = vmatmul.bf16.gmra.mxu0 %v149
    %v1056 = vpop.f32.mrf.mxu0
    %v1057 = vadd.f32 %v1044, %v1056
    %v1058 = vpop.f32.mrf.mxu0
    %1059 = vdwg.mxu0
    %1060 = vmatpush.bf16.msra.mxu0 %v768
    %1061 = vmatpush.bf16.msra.mxu0 %v764
    %1062 = vmatpush.bf16.msra.mxu0 %v760
    %1063 = vmatpush.bf16.msra.mxu0 %v756
    %1064 = vmatpush.bf16.msra.mxu0 %v752
    %1065 = vmatpush.bf16.msra.mxu0 %v748
    %1066 = vmatpush.bf16.msra.mxu0 %v744
    %1067 = vmatpush.bf16.msra.mxu0 %v740
    %1068 = vmatmul.bf16.gmra.mxu0 %v150
    %v1069 = vpop.f32.mrf.mxu0
    %v1070 = vadd.f32 %v1057, %v1069
    %v1071 = vpop.f32.mrf.mxu0
    %1072 = vdwg.mxu0
    %1073 = vmatpush.bf16.msra.mxu0 %v800
    %1074 = vmatpush.bf16.msra.mxu0 %v796
    %1075 = vmatpush.bf16.msra.mxu0 %v792
    %1076 = vmatpush.bf16.msra.mxu0 %v788
    %1077 = vmatpush.bf16.msra.mxu0 %v784
    %1078 = vmatpush.bf16.msra.mxu0 %v780
    %1079 = vmatpush.bf16.msra.mxu0 %v776
    %1080 = vmatpush.bf16.msra.mxu0 %v772
    %1081 = vmatmul.bf16.gmra.mxu0 %v151
    %v1082 = vpop.f32.mrf.mxu0
    %v1083 = vadd.f32 %v1070, %v1082
    %v1084 = vpop.f32.mrf.mxu0
    %1085 = vdwg.mxu0
    %1086 = vmatpush.bf16.msra.mxu0 %v705
    %1087 = vmatpush.bf16.msra.mxu0 %v701
    %1088 = vmatpush.bf16.msra.mxu0 %v697
    %1089 = vmatpush.bf16.msra.mxu0 %v693
    %1090 = vmatpush.bf16.msra.mxu0 %v689
    %1091 = vmatpush.bf16.msra.mxu0 %v685
    %1092 = vmatpush.bf16.msra.mxu0 %v681
    %1093 = vmatpush.bf16.msra.mxu0 %v677
    %1094 = vmatmul.bf16.gmra.mxu0 %v148
    %v1095 = vpop.f32.mrf.mxu0
    %v1096 = vadd.f32 %v285, %v1095
    %v1097 = vpop.f32.mrf.mxu0
    %1098 = vdwg.mxu0
    %1099 = vmatpush.bf16.msra.mxu0 %v737
    %1100 = vmatpush.bf16.msra.mxu0 %v733
    %1101 = vmatpush.bf16.msra.mxu0 %v729
    %1102 = vmatpush.bf16.msra.mxu0 %v725
    %1103 = vmatpush.bf16.msra.mxu0 %v721
    %1104 = vmatpush.bf16.msra.mxu0 %v717
    %1105 = vmatpush.bf16.msra.mxu0 %v713
    %1106 = vmatpush.bf16.msra.mxu0 %v709
    %1107 = vmatmul.bf16.gmra.mxu0 %v149
    %v1108 = vpop.f32.mrf.mxu0
    %v1109 = vadd.f32 %v1096, %v1108
    %v1110 = vpop.f32.mrf.mxu0
    %1111 = vdwg.mxu0
    %1112 = vmatpush.bf16.msra.mxu0 %v769
    %1113 = vmatpush.bf16.msra.mxu0 %v765
    %1114 = vmatpush.bf16.msra.mxu0 %v761
    %1115 = vmatpush.bf16.msra.mxu0 %v757
    %1116 = vmatpush.bf16.msra.mxu0 %v753
    %1117 = vmatpush.bf16.msra.mxu0 %v749
    %1118 = vmatpush.bf16.msra.mxu0 %v745
    %1119 = vmatpush.bf16.msra.mxu0 %v741
    %1120 = vmatmul.bf16.gmra.mxu0 %v150
    %v1121 = vpop.f32.mrf.mxu0
    %v1122 = vadd.f32 %v1109, %v1121
    %v1123 = vpop.f32.mrf.mxu0
    %1124 = vdwg.mxu0
    %1125 = vmatpush.bf16.msra.mxu0 %v801
    %1126 = vmatpush.bf16.msra.mxu0 %v797
    %1127 = vmatpush.bf16.msra.mxu0 %v793
    %1128 = vmatpush.bf16.msra.mxu0 %v789
    %1129 = vmatpush.bf16.msra.mxu0 %v785
    %1130 = vmatpush.bf16.msra.mxu0 %v781
    %1131 = vmatpush.bf16.msra.mxu0 %v777
    %1132 = vmatpush.bf16.msra.mxu0 %v773
    %1133 = vmatmul.bf16.gmra.mxu0 %v151
    %v1134 = vpop.f32.mrf.mxu0
    %v1135 = vadd.f32 %v1122, %v1134
    %v1136 = vpop.f32.mrf.mxu0
    %1137 = vdwg.mxu0
    %v1138 = vmax.f32 %v979, 0.0
    %v1139 = vmax.f32 %v1031, 0.0
    %v1140 = vmax.f32 %v1083, 0.0
    %v1141 = vmax.f32 %v1135, 0.0
    %v1142 = vpack.c.bf16 %v1138, %v1138
    %v1143 = vpack.c.bf16 %v1139, %v1139
    %v1144 = vpack.c.bf16 %v1140, %v1140
    %v1145 = vpack.c.bf16 %v1141, %v1141
    %v1146 = vld [vmem:[#allocation8] sm:$0xff]
    %v1147 = vld [vmem:[#allocation8 + $0x8] sm:$0xff]
    %v1148 = vld [vmem:[#allocation8 + $0x10] sm:$0xff]
    %v1149 = vld [vmem:[#allocation8 + $0x18] sm:$0xff]
    %v1150 = vld [vmem:[#allocation8 + $0x20] sm:$0xff]
    %v1151 = vld [vmem:[#allocation8 + $0x28] sm:$0xff]
    %v1152 = vld [vmem:[#allocation8 + $0x30] sm:$0xff]
    %v1153 = vld [vmem:[#allocation8 + $0x38] sm:$0xff]
    %v1154 = vld [vmem:[#allocation8 + $0x40] sm:$0xff]
    %v1155 = vld [vmem:[#allocation8 + $0x48] sm:$0xff]
    %v1156 = vld [vmem:[#allocation8 + $0x50] sm:$0xff]
    %v1157 = vld [vmem:[#allocation8 + $0x58] sm:$0xff]
    %v1158 = vld [vmem:[#allocation8 + $0x60] sm:$0xff]
    %v1159 = vld [vmem:[#allocation8 + $0x68] sm:$0xff]
    %v1160 = vld [vmem:[#allocation8 + $0x70] sm:$0xff]
    %v1161 = vld [vmem:[#allocation8 + $0x78] sm:$0xff]
    %v1162 = vld [vmem:[#allocation8 + $0x80] sm:$0xff]
    %v1163 = vld [vmem:[#allocation8 + $0x88] sm:$0xff]
    %v1164 = vld [vmem:[#allocation8 + $0x90] sm:$0xff]
    %v1165 = vld [vmem:[#allocation8 + $0x98] sm:$0xff]
    %v1166 = vld [vmem:[#allocation8 + $0xa0] sm:$0xff]
    %v1167 = vld [vmem:[#allocation8 + $0xa8] sm:$0xff]
    %v1168 = vld [vmem:[#allocation8 + $0xb0] sm:$0xff]
    %v1169 = vld [vmem:[#allocation8 + $0xb8] sm:$0xff]
    %v1170 = vld [vmem:[#allocation8 + $0xc0] sm:$0xff]
    %v1171 = vld [vmem:[#allocation8 + $0xc8] sm:$0xff]
    %v1172 = vld [vmem:[#allocation8 + $0xd0] sm:$0xff]
    %v1173 = vld [vmem:[#allocation8 + $0xd8] sm:$0xff]
    %v1174 = vld [vmem:[#allocation8 + $0xe0] sm:$0xff]
    %v1175 = vld [vmem:[#allocation8 + $0xe8] sm:$0xff]
    %v1176 = vld [vmem:[#allocation8 + $0xf0] sm:$0xff]
    %v1177 = vld [vmem:[#allocation8 + $0xf8] sm:$0xff]
    %v1178 = vld [vmem:[#allocation8 + $0x100] sm:$0xff]
    %v1179 = vld [vmem:[#allocation8 + $0x108] sm:$0xff]
    %v1180 = vld [vmem:[#allocation8 + $0x110] sm:$0xff]
    %v1181 = vld [vmem:[#allocation8 + $0x118] sm:$0xff]
    %v1182 = vld [vmem:[#allocation8 + $0x120] sm:$0xff]
    %v1183 = vld [vmem:[#allocation8 + $0x128] sm:$0xff]
    %v1184 = vld [vmem:[#allocation8 + $0x130] sm:$0xff]
    %v1185 = vld [vmem:[#allocation8 + $0x138] sm:$0xff]
    %v1186 = vld [vmem:[#allocation8 + $0x140] sm:$0xff]
    %v1187 = vld [vmem:[#allocation8 + $0x148] sm:$0xff]
    %v1188 = vld [vmem:[#allocation8 + $0x150] sm:$0xff]
    %v1189 = vld [vmem:[#allocation8 + $0x158] sm:$0xff]
    %v1190 = vld [vmem:[#allocation8 + $0x160] sm:$0xff]
    %v1191 = vld [vmem:[#allocation8 + $0x168] sm:$0xff]
    %v1192 = vld [vmem:[#allocation8 + $0x170] sm:$0xff]
    %v1193 = vld [vmem:[#allocation8 + $0x178] sm:$0xff]
    %v1194 = vld [vmem:[#allocation8 + $0x180] sm:$0xff]
    %v1195 = vld [vmem:[#allocation8 + $0x188] sm:$0xff]
    %v1196 = vld [vmem:[#allocation8 + $0x190] sm:$0xff]
    %v1197 = vld [vmem:[#allocation8 + $0x198] sm:$0xff]
    %v1198 = vld [vmem:[#allocation8 + $0x1a0] sm:$0xff]
    %v1199 = vld [vmem:[#allocation8 + $0x1a8] sm:$0xff]
    %v1200 = vld [vmem:[#allocation8 + $0x1b0] sm:$0xff]
    %v1201 = vld [vmem:[#allocation8 + $0x1b8] sm:$0xff]
    %v1202 = vld [vmem:[#allocation8 + $0x1c0] sm:$0xff]
    %v1203 = vld [vmem:[#allocation8 + $0x1c8] sm:$0xff]
    %v1204 = vld [vmem:[#allocation8 + $0x1d0] sm:$0xff]
    %v1205 = vld [vmem:[#allocation8 + $0x1d8] sm:$0xff]
    %v1206 = vld [vmem:[#allocation8 + $0x1e0] sm:$0xff]
    %v1207 = vld [vmem:[#allocation8 + $0x1e8] sm:$0xff]
    %v1208 = vld [vmem:[#allocation8 + $0x1f0] sm:$0xff]
    %v1209 = vld [vmem:[#allocation8 + $0x1f8] sm:$0xff]
    %v1210 = vld [vmem:[%s4] sm:$0x3]
    %v1212 = vperm.slane %v1210, 0
    %v1213 = vperm.slane %v1210, 1
    %v1280 = vunpack.c.l.b16 %v1146
    %v1281 = vunpack.c.h.b16 %v1146
    %v1282 = vunpack.c.l.b16 %v1147
    %v1283 = vunpack.c.h.b16 %v1147
    %v1284 = vunpack.c.l.b16 %v1148
    %v1285 = vunpack.c.h.b16 %v1148
    %v1286 = vunpack.c.l.b16 %v1149
    %v1287 = vunpack.c.h.b16 %v1149
    %v1288 = vunpack.c.l.b16 %v1150
    %v1289 = vunpack.c.h.b16 %v1150
    %v1290 = vunpack.c.l.b16 %v1151
    %v1291 = vunpack.c.h.b16 %v1151
    %v1292 = vunpack.c.l.b16 %v1152
    %v1293 = vunpack.c.h.b16 %v1152
    %v1294 = vunpack.c.l.b16 %v1153
    %v1295 = vunpack.c.h.b16 %v1153
    %v1296 = vunpack.c.l.b16 %v1154
    %v1297 = vunpack.c.h.b16 %v1154
    %v1298 = vunpack.c.l.b16 %v1155
    %v1299 = vunpack.c.h.b16 %v1155
    %v1300 = vunpack.c.l.b16 %v1156
    %v1301 = vunpack.c.h.b16 %v1156
    %v1302 = vunpack.c.l.b16 %v1157
    %v1303 = vunpack.c.h.b16 %v1157
    %v1304 = vunpack.c.l.b16 %v1158
    %v1305 = vunpack.c.h.b16 %v1158
    %v1306 = vunpack.c.l.b16 %v1159
    %v1307 = vunpack.c.h.b16 %v1159
    %v1308 = vunpack.c.l.b16 %v1160
    %v1309 = vunpack.c.h.b16 %v1160
    %v1310 = vunpack.c.l.b16 %v1161
    %v1311 = vunpack.c.h.b16 %v1161
    %v1312 = vunpack.c.l.b16 %v1162
    %v1313 = vunpack.c.h.b16 %v1162
    %v1314 = vunpack.c.l.b16 %v1163
    %v1315 = vunpack.c.h.b16 %v1163
    %v1316 = vunpack.c.l.b16 %v1164
    %v1317 = vunpack.c.h.b16 %v1164
    %v1318 = vunpack.c.l.b16 %v1165
    %v1319 = vunpack.c.h.b16 %v1165
    %v1320 = vunpack.c.l.b16 %v1166
    %v1321 = vunpack.c.h.b16 %v1166
    %v1322 = vunpack.c.l.b16 %v1167
    %v1323 = vunpack.c.h.b16 %v1167
    %v1324 = vunpack.c.l.b16 %v1168
    %v1325 = vunpack.c.h.b16 %v1168
    %v1326 = vunpack.c.l.b16 %v1169
    %v1327 = vunpack.c.h.b16 %v1169
    %v1328 = vunpack.c.l.b16 %v1170
    %v1329 = vunpack.c.h.b16 %v1170
    %v1330 = vunpack.c.l.b16 %v1171
    %v1331 = vunpack.c.h.b16 %v1171
    %v1332 = vunpack.c.l.b16 %v1172
    %v1333 = vunpack.c.h.b16 %v1172
    %v1334 = vunpack.c.l.b16 %v1173
    %v1335 = vunpack.c.h.b16 %v1173
    %v1336 = vunpack.c.l.b16 %v1174
    %v1337 = vunpack.c.h.b16 %v1174
    %v1338 = vunpack.c.l.b16 %v1175
    %v1339 = vunpack.c.h.b16 %v1175
    %v1340 = vunpack.c.l.b16 %v1176
    %v1341 = vunpack.c.h.b16 %v1176
    %v1342 = vunpack.c.l.b16 %v1177
    %v1343 = vunpack.c.h.b16 %v1177
    %v1344 = vunpack.c.l.b16 %v1178
    %v1345 = vunpack.c.h.b16 %v1178
    %v1346 = vunpack.c.l.b16 %v1179
    %v1347 = vunpack.c.h.b16 %v1179
    %v1348 = vunpack.c.l.b16 %v1180
    %v1349 = vunpack.c.h.b16 %v1180
    %v1350 = vunpack.c.l.b16 %v1181
    %v1351 = vunpack.c.h.b16 %v1181
    %v1352 = vunpack.c.l.b16 %v1182
    %v1353 = vunpack.c.h.b16 %v1182
    %v1354 = vunpack.c.l.b16 %v1183
    %v1355 = vunpack.c.h.b16 %v1183
    %v1356 = vunpack.c.l.b16 %v1184
    %v1357 = vunpack.c.h.b16 %v1184
    %v1358 = vunpack.c.l.b16 %v1185
    %v1359 = vunpack.c.h.b16 %v1185
    %v1360 = vunpack.c.l.b16 %v1186
    %v1361 = vunpack.c.h.b16 %v1186
    %v1362 = vunpack.c.l.b16 %v1187
    %v1363 = vunpack.c.h.b16 %v1187
    %v1364 = vunpack.c.l.b16 %v1188
    %v1365 = vunpack.c.h.b16 %v1188
    %v1366 = vunpack.c.l.b16 %v1189
    %v1367 = vunpack.c.h.b16 %v1189
    %v1368 = vunpack.c.l.b16 %v1190
    %v1369 = vunpack.c.h.b16 %v1190
    %v1370 = vunpack.c.l.b16 %v1191
    %v1371 = vunpack.c.h.b16 %v1191
    %v1372 = vunpack.c.l.b16 %v1192
    %v1373 = vunpack.c.h.b16 %v1192
    %v1374 = vunpack.c.l.b16 %v1193
    %v1375 = vunpack.c.h.b16 %v1193
    %v1376 = vunpack.c.l.b16 %v1194
    %v1377 = vunpack.c.h.b16 %v1194
    %v1378 = vunpack.c.l.b16 %v1195
    %v1379 = vunpack.c.h.b16 %v1195
    %v1380 = vunpack.c.l.b16 %v1196
    %v1381 = vunpack.c.h.b16 %v1196
    %v1382 = vunpack.c.l.b16 %v1197
    %v1383 = vunpack.c.h.b16 %v1197
    %v1384 = vunpack.c.l.b16 %v1198
    %v1385 = vunpack.c.h.b16 %v1198
    %v1386 = vunpack.c.l.b16 %v1199
    %v1387 = vunpack.c.h.b16 %v1199
    %v1388 = vunpack.c.l.b16 %v1200
    %v1389 = vunpack.c.h.b16 %v1200
    %v1390 = vunpack.c.l.b16 %v1201
    %v1391 = vunpack.c.h.b16 %v1201
    %v1392 = vunpack.c.l.b16 %v1202
    %v1393 = vunpack.c.h.b16 %v1202
    %v1394 = vunpack.c.l.b16 %v1203
    %v1395 = vunpack.c.h.b16 %v1203
    %v1396 = vunpack.c.l.b16 %v1204
    %v1397 = vunpack.c.h.b16 %v1204
    %v1398 = vunpack.c.l.b16 %v1205
    %v1399 = vunpack.c.h.b16 %v1205
    %v1400 = vunpack.c.l.b16 %v1206
    %v1401 = vunpack.c.h.b16 %v1206
    %v1402 = vunpack.c.l.b16 %v1207
    %v1403 = vunpack.c.h.b16 %v1207
    %v1404 = vunpack.c.l.b16 %v1208
    %v1405 = vunpack.c.h.b16 %v1208
    %v1406 = vunpack.c.l.b16 %v1209
    %v1407 = vunpack.c.h.b16 %v1209
    %v1408 = vpack.c.b16 %v1282, %v1280
    %v1409 = vpack.c.b16 %v1283, %v1281
    %v1410 = vpack.c.b16 %v1286, %v1284
    %v1411 = vpack.c.b16 %v1287, %v1285
    %v1412 = vpack.c.b16 %v1290, %v1288
    %v1413 = vpack.c.b16 %v1291, %v1289
    %v1414 = vpack.c.b16 %v1294, %v1292
    %v1415 = vpack.c.b16 %v1295, %v1293
    %v1416 = vpack.c.b16 %v1298, %v1296
    %v1417 = vpack.c.b16 %v1299, %v1297
    %v1418 = vpack.c.b16 %v1302, %v1300
    %v1419 = vpack.c.b16 %v1303, %v1301
    %v1420 = vpack.c.b16 %v1306, %v1304
    %v1421 = vpack.c.b16 %v1307, %v1305
    %v1422 = vpack.c.b16 %v1310, %v1308
    %v1423 = vpack.c.b16 %v1311, %v1309
    %v1424 = vpack.c.b16 %v1314, %v1312
    %v1425 = vpack.c.b16 %v1315, %v1313
    %v1426 = vpack.c.b16 %v1318, %v1316
    %v1427 = vpack.c.b16 %v1319, %v1317
    %v1428 = vpack.c.b16 %v1322, %v1320
    %v1429 = vpack.c.b16 %v1323, %v1321
    %v1430 = vpack.c.b16 %v1326, %v1324
    %v1431 = vpack.c.b16 %v1327, %v1325
    %v1432 = vpack.c.b16 %v1330, %v1328
    %v1433 = vpack.c.b16 %v1331, %v1329
    %v1434 = vpack.c.b16 %v1334, %v1332
    %v1435 = vpack.c.b16 %v1335, %v1333
    %v1436 = vpack.c.b16 %v1338, %v1336
    %v1437 = vpack.c.b16 %v1339, %v1337
    %v1438 = vpack.c.b16 %v1342, %v1340
    %v1439 = vpack.c.b16 %v1343, %v1341
    %v1440 = vpack.c.b16 %v1346, %v1344
    %v1441 = vpack.c.b16 %v1347, %v1345
    %v1442 = vpack.c.b16 %v1350, %v1348
    %v1443 = vpack.c.b16 %v1351, %v1349
    %v1444 = vpack.c.b16 %v1354, %v1352
    %v1445 = vpack.c.b16 %v1355, %v1353
    %v1446 = vpack.c.b16 %v1358, %v1356
    %v1447 = vpack.c.b16 %v1359, %v1357
    %v1448 = vpack.c.b16 %v1362, %v1360
    %v1449 = vpack.c.b16 %v1363, %v1361
    %v1450 = vpack.c.b16 %v1366, %v1364
    %v1451 = vpack.c.b16 %v1367, %v1365
    %v1452 = vpack.c.b16 %v1370, %v1368
    %v1453 = vpack.c.b16 %v1371, %v1369
    %v1454 = vpack.c.b16 %v1374, %v1372
    %v1455 = vpack.c.b16 %v1375, %v1373
    %v1456 = vpack.c.b16 %v1378, %v1376
    %v1457 = vpack.c.b16 %v1379, %v1377
    %v1458 = vpack.c.b16 %v1382, %v1380
    %v1459 = vpack.c.b16 %v1383, %v1381
    %v1460 = vpack.c.b16 %v1386, %v1384
    %v1461 = vpack.c.b16 %v1387, %v1385
    %v1462 = vpack.c.b16 %v1390, %v1388
    %v1463 = vpack.c.b16 %v1391, %v1389
    %v1464 = vpack.c.b16 %v1394, %v1392
    %v1465 = vpack.c.b16 %v1395, %v1393
    %v1466 = vpack.c.b16 %v1398, %v1396
    %v1467 = vpack.c.b16 %v1399, %v1397
    %v1468 = vpack.c.b16 %v1402, %v1400
    %v1469 = vpack.c.b16 %v1403, %v1401
    %v1470 = vpack.c.b16 %v1406, %v1404
    %v1471 = vpack.c.b16 %v1407, %v1405
    %1536 = vmatpush.bf16.msra.mxu0 %v1422
    %1537 = vmatpush.bf16.msra.mxu0 %v1420
    %1538 = vmatpush.bf16.msra.mxu0 %v1418
    %1539 = vmatpush.bf16.msra.mxu0 %v1416
    %1540 = vmatpush.bf16.msra.mxu0 %v1414
    %1541 = vmatpush.bf16.msra.mxu0 %v1412
    %1542 = vmatpush.bf16.msra.mxu0 %v1410
    %1543 = vmatpush.bf16.msra.mxu0 %v1408
    %1544 = vmatmul.bf16.gmra.mxu0 %v1142
    %v1545 = vpop.f32.mrf.mxu0
    %v1546 = vadd.f32 %v1212, %v1545
    %v1547 = vpop.f32.mrf.mxu0
    %1548 = vdwg.mxu0
    %1549 = vmatpush.bf16.msra.mxu0 %v1438
    %1550 = vmatpush.bf16.msra.mxu0 %v1436
    %1551 = vmatpush.bf16.msra.mxu0 %v1434
    %1552 = vmatpush.bf16.msra.mxu0 %v1432
    %1553 = vmatpush.bf16.msra.mxu0 %v1430
    %1554 = vmatpush.bf16.msra.mxu0 %v1428
    %1555 = vmatpush.bf16.msra.mxu0 %v1426
    %1556 = vmatpush.bf16.msra.mxu0 %v1424
    %1557 = vmatmul.bf16.gmra.mxu0 %v1143
    %v1558 = vpop.f32.mrf.mxu0
    %v1559 = vadd.f32 %v1546, %v1558
    %v1560 = vpop.f32.mrf.mxu0
    %1561 = vdwg.mxu0
    %1562 = vmatpush.bf16.msra.mxu0 %v1454
    %1563 = vmatpush.bf16.msra.mxu0 %v1452
    %1564 = vmatpush.bf16.msra.mxu0 %v1450
    %1565 = vmatpush.bf16.msra.mxu0 %v1448
    %1566 = vmatpush.bf16.msra.mxu0 %v1446
    %1567 = vmatpush.bf16.msra.mxu0 %v1444
    %1568 = vmatpush.bf16.msra.mxu0 %v1442
    %1569 = vmatpush.bf16.msra.mxu0 %v1440
    %1570 = vmatmul.bf16.gmra.mxu0 %v1144
    %v1571 = vpop.f32.mrf.mxu0
    %v1572 = vadd.f32 %v1559, %v1571
    %v1573 = vpop.f32.mrf.mxu0
    %1574 = vdwg.mxu0
    %1575 = vmatpush.bf16.msra.mxu0 %v1470
    %1576 = vmatpush.bf16.msra.mxu0 %v1468
    %1577 = vmatpush.bf16.msra.mxu0 %v1466
    %1578 = vmatpush.bf16.msra.mxu0 %v1464
    %1579 = vmatpush.bf16.msra.mxu0 %v1462
    %1580 = vmatpush.bf16.msra.mxu0 %v1460
    %1581 = vmatpush.bf16.msra.mxu0 %v1458
    %1582 = vmatpush.bf16.msra.mxu0 %v1456
    %1583 = vmatmul.bf16.gmra.mxu0 %v1145
    %v1584 = vpop.f32.mrf.mxu0
    %v1585 = vadd.f32 %v1572, %v1584
    %v1586 = vpop.f32.mrf.mxu0
    %1587 = vdwg.mxu0
    %1588 = vmatpush.bf16.msra.mxu0 %v1423
    %1589 = vmatpush.bf16.msra.mxu0 %v1421
    %1590 = vmatpush.bf16.msra.mxu0 %v1419
    %1591 = vmatpush.bf16.msra.mxu0 %v1417
    %1592 = vmatpush.bf16.msra.mxu0 %v1415
    %1593 = vmatpush.bf16.msra.mxu0 %v1413
    %1594 = vmatpush.bf16.msra.mxu0 %v1411
    %1595 = vmatpush.bf16.msra.mxu0 %v1409
    %1596 = vmatmul.bf16.gmra.mxu0 %v1142
    %v1597 = vpop.f32.mrf.mxu0
    %v1598 = vadd.f32 %v1213, %v1597
    %v1599 = vpop.f32.mrf.mxu0
    %1600 = vdwg.mxu0
    %1601 = vmatpush.bf16.msra.mxu0 %v1439
    %1602 = vmatpush.bf16.msra.mxu0 %v1437
    %1603 = vmatpush.bf16.msra.mxu0 %v1435
    %1604 = vmatpush.bf16.msra.mxu0 %v1433
    %1605 = vmatpush.bf16.msra.mxu0 %v1431
    %1606 = vmatpush.bf16.msra.mxu0 %v1429
    %1607 = vmatpush.bf16.msra.mxu0 %v1427
    %1608 = vmatpush.bf16.msra.mxu0 %v1425
    %1609 = vmatmul.bf16.gmra.mxu0 %v1143
    %v1610 = vpop.f32.mrf.mxu0
    %v1611 = vadd.f32 %v1598, %v1610
    %v1612 = vpop.f32.mrf.mxu0
    %1613 = vdwg.mxu0
    %1614 = vmatpush.bf16.msra.mxu0 %v1455
    %1615 = vmatpush.bf16.msra.mxu0 %v1453
    %1616 = vmatpush.bf16.msra.mxu0 %v1451
    %1617 = vmatpush.bf16.msra.mxu0 %v1449
    %1618 = vmatpush.bf16.msra.mxu0 %v1447
    %1619 = vmatpush.bf16.msra.mxu0 %v1445
    %1620 = vmatpush.bf16.msra.mxu0 %v1443
    %1621 = vmatpush.bf16.msra.mxu0 %v1441
    %1622 = vmatmul.bf16.gmra.mxu0 %v1144
    %v1623 = vpop.f32.mrf.mxu0
    %v1624 = vadd.f32 %v1611, %v1623
    %v1625 = vpop.f32.mrf.mxu0
    %1626 = vdwg.mxu0
    %1627 = vmatpush.bf16.msra.mxu0 %v1471
    %1628 = vmatpush.bf16.msra.mxu0 %v1469
    %1629 = vmatpush.bf16.msra.mxu0 %v1467
    %1630 = vmatpush.bf16.msra.mxu0 %v1465
    %1631 = vmatpush.bf16.msra.mxu0 %v1463
    %1632 = vmatpush.bf16.msra.mxu0 %v1461
    %1633 = vmatpush.bf16.msra.mxu0 %v1459
    %1634 = vmatpush.bf16.msra.mxu0 %v1457
    %1635 = vmatmul.bf16.gmra.mxu0 %v1145
    %v1636 = vpop.f32.mrf.mxu0
    %v1637 = vadd.f32 %v1624, %v1636
    %v1638 = vpop.f32.mrf.mxu0
    %1639 = vdwg.mxu0
    %v1640 = vmax.f32 %v1585, 0.0
    %v1641 = vmax.f32 %v1637, 0.0
    %v1642 = vpack.c.bf16 %v1640, %v1640
    %v1643 = vpack.c.bf16 %v1641, %v1641
    %v1644 = vld [vmem:[#allocation10] sm:$0xff]
    %v1645 = vld [vmem:[#allocation10 + $0x8] sm:$0xff]
    %v1646 = vld [vmem:[#allocation10 + $0x10] sm:$0xff]
    %v1647 = vld [vmem:[#allocation10 + $0x18] sm:$0xff]
    %v1648 = vld [vmem:[#allocation10 + $0x20] sm:$0xff]
    %v1649 = vld [vmem:[#allocation10 + $0x28] sm:$0xff]
    %v1650 = vld [vmem:[#allocation10 + $0x30] sm:$0xff]
    %v1651 = vld [vmem:[#allocation10 + $0x38] sm:$0xff]
    %v1652 = vld [vmem:[#allocation10 + $0x40] sm:$0xff]
    %v1653 = vld [vmem:[#allocation10 + $0x48] sm:$0xff]
    %v1654 = vld [vmem:[#allocation10 + $0x50] sm:$0xff]
    %v1655 = vld [vmem:[#allocation10 + $0x58] sm:$0xff]
    %v1656 = vld [vmem:[#allocation10 + $0x60] sm:$0xff]
    %v1657 = vld [vmem:[#allocation10 + $0x68] sm:$0xff]
    %v1658 = vld [vmem:[#allocation10 + $0x70] sm:$0xff]
    %v1659 = vld [vmem:[#allocation10 + $0x78] sm:$0xff]
    %v1660 = vld [vmem:[#allocation10 + $0x80] sm:$0xff]
    %v1661 = vld [vmem:[#allocation10 + $0x88] sm:$0xff]
    %v1662 = vld [vmem:[#allocation10 + $0x90] sm:$0xff]
    %v1663 = vld [vmem:[#allocation10 + $0x98] sm:$0xff]
    %v1664 = vld [vmem:[#allocation10 + $0xa0] sm:$0xff]
    %v1665 = vld [vmem:[#allocation10 + $0xa8] sm:$0xff]
    %v1666 = vld [vmem:[#allocation10 + $0xb0] sm:$0xff]
    %v1667 = vld [vmem:[#allocation10 + $0xb8] sm:$0xff]
    %v1668 = vld [vmem:[#allocation10 + $0xc0] sm:$0xff]
    %v1669 = vld [vmem:[#allocation10 + $0xc8] sm:$0xff]
    %v1670 = vld [vmem:[#allocation10 + $0xd0] sm:$0xff]
    %v1671 = vld [vmem:[#allocation10 + $0xd8] sm:$0xff]
    %v1672 = vld [vmem:[#allocation10 + $0xe0] sm:$0xff]
    %v1673 = vld [vmem:[#allocation10 + $0xe8] sm:$0xff]
    %v1674 = vld [vmem:[#allocation10 + $0xf0] sm:$0xff]
    %v1675 = vld [vmem:[#allocation10 + $0xf8] sm:$0xff]
    %v1676 = vld [vmem:[%s6] sm:$0x3]
    %v1678 = vperm.slane %v1676, 0
    %v1679 = vperm.slane %v1676, 1
    %v1714 = vunpack.c.l.b16 %v1644
    %v1715 = vunpack.c.h.b16 %v1644
    %v1716 = vunpack.c.l.b16 %v1645
    %v1717 = vunpack.c.h.b16 %v1645
    %v1718 = vunpack.c.l.b16 %v1646
    %v1719 = vunpack.c.h.b16 %v1646
    %v1720 = vunpack.c.l.b16 %v1647
    %v1721 = vunpack.c.h.b16 %v1647
    %v1722 = vunpack.c.l.b16 %v1648
    %v1723 = vunpack.c.h.b16 %v1648
    %v1724 = vunpack.c.l.b16 %v1649
    %v1725 = vunpack.c.h.b16 %v1649
    %v1726 = vunpack.c.l.b16 %v1650
    %v1727 = vunpack.c.h.b16 %v1650
    %v1728 = vunpack.c.l.b16 %v1651
    %v1729 = vunpack.c.h.b16 %v1651
    %v1730 = vunpack.c.l.b16 %v1652
    %v1731 = vunpack.c.h.b16 %v1652
    %v1732 = vunpack.c.l.b16 %v1653
    %v1733 = vunpack.c.h.b16 %v1653
    %v1734 = vunpack.c.l.b16 %v1654
    %v1735 = vunpack.c.h.b16 %v1654
    %v1736 = vunpack.c.l.b16 %v1655
    %v1737 = vunpack.c.h.b16 %v1655
    %v1738 = vunpack.c.l.b16 %v1656
    %v1739 = vunpack.c.h.b16 %v1656
    %v1740 = vunpack.c.l.b16 %v1657
    %v1741 = vunpack.c.h.b16 %v1657
    %v1742 = vunpack.c.l.b16 %v1658
    %v1743 = vunpack.c.h.b16 %v1658
    %v1744 = vunpack.c.l.b16 %v1659
    %v1745 = vunpack.c.h.b16 %v1659
    %v1746 = vunpack.c.l.b16 %v1660
    %v1747 = vunpack.c.h.b16 %v1660
    %v1748 = vunpack.c.l.b16 %v1661
    %v1749 = vunpack.c.h.b16 %v1661
    %v1750 = vunpack.c.l.b16 %v1662
    %v1751 = vunpack.c.h.b16 %v1662
    %v1752 = vunpack.c.l.b16 %v1663
    %v1753 = vunpack.c.h.b16 %v1663
    %v1754 = vunpack.c.l.b16 %v1664
    %v1755 = vunpack.c.h.b16 %v1664
    %v1756 = vunpack.c.l.b16 %v1665
    %v1757 = vunpack.c.h.b16 %v1665
    %v1758 = vunpack.c.l.b16 %v1666
    %v1759 = vunpack.c.h.b16 %v1666
    %v1760 = vunpack.c.l.b16 %v1667
    %v1761 = vunpack.c.h.b16 %v1667
    %v1762 = vunpack.c.l.b16 %v1668
    %v1763 = vunpack.c.h.b16 %v1668
    %v1764 = vunpack.c.l.b16 %v1669
    %v1765 = vunpack.c.h.b16 %v1669
    %v1766 = vunpack.c.l.b16 %v1670
    %v1767 = vunpack.c.h.b16 %v1670
    %v1768 = vunpack.c.l.b16 %v1671
    %v1769 = vunpack.c.h.b16 %v1671
    %v1770 = vunpack.c.l.b16 %v1672
    %v1771 = vunpack.c.h.b16 %v1672
    %v1772 = vunpack.c.l.b16 %v1673
    %v1773 = vunpack.c.h.b16 %v1673
    %v1774 = vunpack.c.l.b16 %v1674
    %v1775 = vunpack.c.h.b16 %v1674
    %v1776 = vunpack.c.l.b16 %v1675
    %v1777 = vunpack.c.h.b16 %v1675
    %v1778 = vpack.c.b16 %v1716, %v1714
    %v1779 = vpack.c.b16 %v1717, %v1715
    %v1780 = vpack.c.b16 %v1720, %v1718
    %v1781 = vpack.c.b16 %v1721, %v1719
    %v1782 = vpack.c.b16 %v1724, %v1722
    %v1783 = vpack.c.b16 %v1725, %v1723
    %v1784 = vpack.c.b16 %v1728, %v1726
    %v1785 = vpack.c.b16 %v1729, %v1727
    %v1786 = vpack.c.b16 %v1732, %v1730
    %v1787 = vpack.c.b16 %v1733, %v1731
    %v1788 = vpack.c.b16 %v1736, %v1734
    %v1789 = vpack.c.b16 %v1737, %v1735
    %v1790 = vpack.c.b16 %v1740, %v1738
    %v1791 = vpack.c.b16 %v1741, %v1739
    %v1792 = vpack.c.b16 %v1744, %v1742
    %v1793 = vpack.c.b16 %v1745, %v1743
    %v1794 = vpack.c.b16 %v1748, %v1746
    %v1795 = vpack.c.b16 %v1749, %v1747
    %v1796 = vpack.c.b16 %v1752, %v1750
    %v1797 = vpack.c.b16 %v1753, %v1751
    %v1798 = vpack.c.b16 %v1756, %v1754
    %v1799 = vpack.c.b16 %v1757, %v1755
    %v1800 = vpack.c.b16 %v1760, %v1758
    %v1801 = vpack.c.b16 %v1761, %v1759
    %v1802 = vpack.c.b16 %v1764, %v1762
    %v1803 = vpack.c.b16 %v1765, %v1763
    %v1804 = vpack.c.b16 %v1768, %v1766
    %v1805 = vpack.c.b16 %v1769, %v1767
    %v1806 = vpack.c.b16 %v1772, %v1770
    %v1807 = vpack.c.b16 %v1773, %v1771
    %v1808 = vpack.c.b16 %v1776, %v1774
    %v1809 = vpack.c.b16 %v1777, %v1775
    %1842 = vmatpush.bf16.msra.mxu0 %v1792
    %1843 = vmatpush.bf16.msra.mxu0 %v1790
    %1844 = vmatpush.bf16.msra.mxu0 %v1788
    %1845 = vmatpush.bf16.msra.mxu0 %v1786
    %1846 = vmatpush.bf16.msra.mxu0 %v1784
    %1847 = vmatpush.bf16.msra.mxu0 %v1782
    %1848 = vmatpush.bf16.msra.mxu0 %v1780
    %1849 = vmatpush.bf16.msra.mxu0 %v1778
    %1850 = vmatmul.bf16.gmra.mxu0 %v1642
    %v1851 = vpop.f32.mrf.mxu0
    %v1852 = vadd.f32 %v1678, %v1851
    %v1853 = vpop.f32.mrf.mxu0
    %1854 = vdwg.mxu0
    %1855 = vmatpush.bf16.msra.mxu0 %v1808
    %1856 = vmatpush.bf16.msra.mxu0 %v1806
    %1857 = vmatpush.bf16.msra.mxu0 %v1804
    %1858 = vmatpush.bf16.msra.mxu0 %v1802
    %1859 = vmatpush.bf16.msra.mxu0 %v1800
    %1860 = vmatpush.bf16.msra.mxu0 %v1798
    %1861 = vmatpush.bf16.msra.mxu0 %v1796
    %1862 = vmatpush.bf16.msra.mxu0 %v1794
    %1863 = vmatmul.bf16.gmra.mxu0 %v1643
    %v1864 = vpop.f32.mrf.mxu0
    %v1865 = vadd.f32 %v1852, %v1864
    %v1866 = vpop.f32.mrf.mxu0
    %1867 = vdwg.mxu0
    %1868 = vmatpush.bf16.msra.mxu0 %v1793
    %1869 = vmatpush.bf16.msra.mxu0 %v1791
    %1870 = vmatpush.bf16.msra.mxu0 %v1789
    %1871 = vmatpush.bf16.msra.mxu0 %v1787
    %1872 = vmatpush.bf16.msra.mxu0 %v1785
    %1873 = vmatpush.bf16.msra.mxu0 %v1783
    %1874 = vmatpush.bf16.msra.mxu0 %v1781
    %1875 = vmatpush.bf16.msra.mxu0 %v1779
    %1876 = vmatmul.bf16.gmra.mxu0 %v1642
    %v1877 = vpop.f32.mrf.mxu0
    %v1878 = vadd.f32 %v1679, %v1877
    %v1879 = vpop.f32.mrf.mxu0
    %1880 = vdwg.mxu0
    %1881 = vmatpush.bf16.msra.mxu0 %v1809
    %1882 = vmatpush.bf16.msra.mxu0 %v1807
    %1883 = vmatpush.bf16.msra.mxu0 %v1805
    %1884 = vmatpush.bf16.msra.mxu0 %v1803
    %1885 = vmatpush.bf16.msra.mxu0 %v1801
    %1886 = vmatpush.bf16.msra.mxu0 %v1799
    %1887 = vmatpush.bf16.msra.mxu0 %v1797
    %1888 = vmatpush.bf16.msra.mxu0 %v1795
    %1889 = vmatmul.bf16.gmra.mxu0 %v1643
    %v1890 = vpop.f32.mrf.mxu0
    %v1891 = vadd.f32 %v1878, %v1890
    %v1892 = vpop.f32.mrf.mxu0
    %1893 = vdwg.mxu0
    %v1894 = vmax.f32 %v1865, 0.0
    %v1895 = vmax.f32 %v1891, 0.0
    %v1896 = vpack.c.bf16 %v1894, %v1894
    %v1897 = vpack.c.bf16 %v1895, %v1895
    %v1898 = vld [vmem:[#allocation11] sm:$0xf]
    %v1899 = vld [vmem:[#allocation11 + $0x4] sm:$0xf]
    %v1900 = vld [vmem:[#allocation11 + $0x8] sm:$0xf]
    %v1901 = vld [vmem:[#allocation11 + $0xc] sm:$0xf]
    %v1902 = vld [vmem:[#allocation11 + $0x10] sm:$0xf]
    %v1903 = vld [vmem:[#allocation11 + $0x14] sm:$0xf]
    %v1904 = vld [vmem:[#allocation11 + $0x18] sm:$0xf]
    %v1905 = vld [vmem:[#allocation11 + $0x1c] sm:$0xf]
    %v1906 = vld [vmem:[#allocation11 + $0x20] sm:$0xf]
    %v1907 = vld [vmem:[#allocation11 + $0x24] sm:$0xf]
    %v1908 = vld [vmem:[#allocation11 + $0x28] sm:$0xf]
    %v1909 = vld [vmem:[#allocation11 + $0x2c] sm:$0xf]
    %v1910 = vld [vmem:[#allocation11 + $0x30] sm:$0xf]
    %v1911 = vld [vmem:[#allocation11 + $0x34] sm:$0xf]
    %v1912 = vld [vmem:[#allocation11 + $0x38] sm:$0xf]
    %v1913 = vld [vmem:[#allocation11 + $0x3c] sm:$0xf]
    %v1914 = vld [vmem:[#allocation11 + $0x40] sm:$0xf]
    %v1915 = vld [vmem:[#allocation11 + $0x44] sm:$0xf]
    %v1916 = vld [vmem:[#allocation11 + $0x48] sm:$0xf]
    %v1917 = vld [vmem:[#allocation11 + $0x4c] sm:$0xf]
    %v1918 = vld [vmem:[#allocation11 + $0x50] sm:$0xf]
    %v1919 = vld [vmem:[#allocation11 + $0x54] sm:$0xf]
    %v1920 = vld [vmem:[#allocation11 + $0x58] sm:$0xf]
    %v1921 = vld [vmem:[#allocation11 + $0x5c] sm:$0xf]
    %v1922 = vld [vmem:[#allocation11 + $0x60] sm:$0xf]
    %v1923 = vld [vmem:[#allocation11 + $0x64] sm:$0xf]
    %v1924 = vld [vmem:[#allocation11 + $0x68] sm:$0xf]
    %v1925 = vld [vmem:[#allocation11 + $0x6c] sm:$0xf]
    %v1926 = vld [vmem:[#allocation11 + $0x70] sm:$0xf]
    %v1927 = vld [vmem:[#allocation11 + $0x74] sm:$0xf]
    %v1928 = vld [vmem:[#allocation11 + $0x78] sm:$0xf]
    %v1929 = vld [vmem:[#allocation11 + $0x7c] sm:$0xf]
    %v1930 = vld [vmem:[%s8] sm:$0x1]
    %v1932 = vperm.slane %v1930, 0
    %v1966 = vunpack.c.l.b16 %v1898
    %v1967 = vunpack.c.l.b16 %v1899
    %v1968 = vunpack.c.l.b16 %v1900
    %v1969 = vunpack.c.l.b16 %v1901
    %v1970 = vunpack.c.l.b16 %v1902
    %v1971 = vunpack.c.l.b16 %v1903
    %v1972 = vunpack.c.l.b16 %v1904
    %v1973 = vunpack.c.l.b16 %v1905
    %v1974 = vunpack.c.l.b16 %v1906
    %v1975 = vunpack.c.l.b16 %v1907
    %v1976 = vunpack.c.l.b16 %v1908
    %v1977 = vunpack.c.l.b16 %v1909
    %v1978 = vunpack.c.l.b16 %v1910
    %v1979 = vunpack.c.l.b16 %v1911
    %v1980 = vunpack.c.l.b16 %v1912
    %v1981 = vunpack.c.l.b16 %v1913
    %v1982 = vunpack.c.l.b16 %v1914
    %v1983 = vunpack.c.l.b16 %v1915
    %v1984 = vunpack.c.l.b16 %v1916
    %v1985 = vunpack.c.l.b16 %v1917
    %v1986 = vunpack.c.l.b16 %v1918
    %v1987 = vunpack.c.l.b16 %v1919
    %v1988 = vunpack.c.l.b16 %v1920
    %v1989 = vunpack.c.l.b16 %v1921
    %v1990 = vunpack.c.l.b16 %v1922
    %v1991 = vunpack.c.l.b16 %v1923
    %v1992 = vunpack.c.l.b16 %v1924
    %v1993 = vunpack.c.l.b16 %v1925
    %v1994 = vunpack.c.l.b16 %v1926
    %v1995 = vunpack.c.l.b16 %v1927
    %v1996 = vunpack.c.l.b16 %v1928
    %v1997 = vunpack.c.l.b16 %v1929
    %v1998 = vpack.c.b16 %v1967, %v1966
    %v1999 = vpack.c.b16 %v1969, %v1968
    %v2000 = vpack.c.b16 %v1971, %v1970
    %v2001 = vpack.c.b16 %v1973, %v1972
    %v2002 = vpack.c.b16 %v1975, %v1974
    %v2003 = vpack.c.b16 %v1977, %v1976
    %v2004 = vpack.c.b16 %v1979, %v1978
    %v2005 = vpack.c.b16 %v1981, %v1980
    %v2006 = vpack.c.b16 %v1983, %v1982
    %v2007 = vpack.c.b16 %v1985, %v1984
    %v2008 = vpack.c.b16 %v1987, %v1986
    %v2009 = vpack.c.b16 %v1989, %v1988
    %v2010 = vpack.c.b16 %v1991, %v1990
    %v2011 = vpack.c.b16 %v1993, %v1992
    %v2012 = vpack.c.b16 %v1995, %v1994
    %v2013 = vpack.c.b16 %v1997, %v1996
    %2030 = vmatpush.bf16.msra.mxu0 %v2005
    %2031 = vmatpush.bf16.msra.mxu0 %v2004
    %2032 = vmatpush.bf16.msra.mxu0 %v2003
    %2033 = vmatpush.bf16.msra.mxu0 %v2002
    %2034 = vmatpush.bf16.msra.mxu0 %v2001
    %2035 = vmatpush.bf16.msra.mxu0 %v2000
    %2036 = vmatpush.bf16.msra.mxu0 %v1999
    %2037 = vmatpush.bf16.msra.mxu0 %v1998
    %2038 = vmatmul.bf16.gmra.mxu0 %v1896
    %v2039 = vpop.f32.mrf.mxu0
    %v2040 = vadd.f32 %v1932, %v2039
    %v2041 = vpop.f32.mrf.mxu0
    %2042 = vdwg.mxu0
    %2043 = vmatpush.bf16.msra.mxu0 %v2013
    %2044 = vmatpush.bf16.msra.mxu0 %v2012
    %2045 = vmatpush.bf16.msra.mxu0 %v2011
    %2046 = vmatpush.bf16.msra.mxu0 %v2010
    %2047 = vmatpush.bf16.msra.mxu0 %v2009
    %2048 = vmatpush.bf16.msra.mxu0 %v2008
    %2049 = vmatpush.bf16.msra.mxu0 %v2007
    %2050 = vmatpush.bf16.msra.mxu0 %v2006
    %2051 = vmatmul.bf16.gmra.mxu0 %v1897
    %v2052 = vpop.f32.mrf.mxu0
    %v2053 = vadd.f32 %v2040, %v2052
    %v2054 = vpop.f32.mrf.mxu0
    %2055 = vdwg.mxu0
    %v2056 = vmax.f32 %v2053, 0.0
    %v2057 = vpack.c.bf16 %v2056, %v2056
    %v2058 = vld [vmem:[#allocation13] sm:$0xf]
    %v2059 = vld [vmem:[#allocation13 + $0x4] sm:$0xf]
    %v2060 = vld [vmem:[#allocation13 + $0x8] sm:$0xf]
    %v2061 = vld [vmem:[#allocation13 + $0xc] sm:$0xf]
    %v2062 = vld [vmem:[#allocation13 + $0x10] sm:$0xf]
    %v2063 = vld [vmem:[#allocation13 + $0x14] sm:$0xf]
    %v2064 = vld [vmem:[#allocation13 + $0x18] sm:$0xf]
    %v2065 = vld [vmem:[#allocation13 + $0x1c] sm:$0xf]
    %v2066 = vld [vmem:[#allocation13 + $0x20] sm:$0xf]
    %v2067 = vld [vmem:[#allocation13 + $0x24] sm:$0xf]
    %v2068 = vld [vmem:[#allocation13 + $0x28] sm:$0xf]
    %v2069 = vld [vmem:[#allocation13 + $0x2c] sm:$0xf]
    %v2070 = vld [vmem:[#allocation13 + $0x30] sm:$0xf]
    %v2071 = vld [vmem:[#allocation13 + $0x34] sm:$0xf]
    %v2072 = vld [vmem:[#allocation13 + $0x38] sm:$0xf]
    %v2073 = vld [vmem:[#allocation13 + $0x3c] sm:$0xf]
    %v2074 = vld [vmem:[%s10] sm:$0x1]
    %v2076 = vperm.slane %v2074, 0
    %v2094 = vunpack.c.l.b16 %v2058
    %v2095 = vunpack.c.l.b16 %v2059
    %v2096 = vunpack.c.l.b16 %v2060
    %v2097 = vunpack.c.l.b16 %v2061
    %v2098 = vunpack.c.l.b16 %v2062
    %v2099 = vunpack.c.l.b16 %v2063
    %v2100 = vunpack.c.l.b16 %v2064
    %v2101 = vunpack.c.l.b16 %v2065
    %v2102 = vunpack.c.l.b16 %v2066
    %v2103 = vunpack.c.l.b16 %v2067
    %v2104 = vunpack.c.l.b16 %v2068
    %v2105 = vunpack.c.l.b16 %v2069
    %v2106 = vunpack.c.l.b16 %v2070
    %v2107 = vunpack.c.l.b16 %v2071
    %v2108 = vunpack.c.l.b16 %v2072
    %v2109 = vunpack.c.l.b16 %v2073
    %v2110 = vpack.c.b16 %v2095, %v2094
    %v2111 = vpack.c.b16 %v2097, %v2096
    %v2112 = vpack.c.b16 %v2099, %v2098
    %v2113 = vpack.c.b16 %v2101, %v2100
    %v2114 = vpack.c.b16 %v2103, %v2102
    %v2115 = vpack.c.b16 %v2105, %v2104
    %v2116 = vpack.c.b16 %v2107, %v2106
    %v2117 = vpack.c.b16 %v2109, %v2108
    %2126 = vmatpush.bf16.msra.mxu0 %v2117
    %2127 = vmatpush.bf16.msra.mxu0 %v2116
    %2128 = vmatpush.bf16.msra.mxu0 %v2115
    %2129 = vmatpush.bf16.msra.mxu0 %v2114
    %2130 = vmatpush.bf16.msra.mxu0 %v2113
    %2131 = vmatpush.bf16.msra.mxu0 %v2112
    %2132 = vmatpush.bf16.msra.mxu0 %v2111
    %2133 = vmatpush.bf16.msra.mxu0 %v2110
    %2134 = vmatmul.bf16.gmra.mxu0 %v2057
    %v2135 = vpop.f32.mrf.mxu0
    %v2136 = vadd.f32 %v2076, %v2135
    %v2137 = vpop.f32.mrf.mxu0
    %2138 = vdwg.mxu0
    %2139 = vst [vmem:[#allocation14] sm:$0xff] %v2136
    // Predicated region
    $region74: #{tpu_custom_call.1} parent=1 // pred_check
      _
    $region75: #{tpu_custom_call.1} parent=1 // pred_check_branch
      %2141 = sbr.rel (0) target = $region77
    $region76: #{tpu_custom_call.1} parent=1 // pred_region
      %2143 = vsyncadd [#allocation4], 0
      %s2145 = sshll.u32 [#allocation14], 4
      %s2146 = int_to_ptr.vmem [resolvable:$true] %s2145
      %s2147 = sshll.u32 %s11, 4
      %s2148 = int_to_ptr.hbm [resolvable:$true] %s2147
      %2150 = dma.vmem_to_hbm [thread:$0]  %s2146, 128, %s2148, [#allocation4]
    $region77: #{tpu_custom_call.1} parent=1 // pred_fallthru
      _
    // Predicated region
    $region78: #{tpu_custom_call.1} parent=1 // pred_check
      _
    $region79: #{tpu_custom_call.1} parent=1 // pred_check_branch
      %2152 = sbr.rel (0) target = $region81
    $region80: #{tpu_custom_call.1} parent=1 // pred_region
      %2154 = dma.done [#allocation4], 128
    $region81: #{tpu_custom_call.1} parent=1 // pred_fallthru
      _
    %2155 = vsyncpa [#allocation3], 1
    %2156 = vsyncpa [#allocation6], 1
    %2157 = vsyncpa [#allocation9], 1
    %2158 = vsyncpa [#allocation12], 1
    %2159 = vsyncpa [#allocation4], 1

</llo_original>
